<compile_context>
chip_gen: v5e
topology: v5e:2x2
jax: 0.10.0
libtpu: 0.0.40
codegen_flags: <defaults>
</compile_context>

<pallas_src>
import jax
import jax.numpy as jnp
from jax.experimental import pallas as pl
from jax.experimental.pallas import tpu as pltpu

# ---------------- static configuration (small, TPU-friendly) ----------------
B = 2            # batch
T = 8            # sequence length
D_MODEL = 32     # d_model
D_INNER = 64     # d_inner
N_HEAD = 2       # n_head
D_K = 16         # d_k
D_V = 16         # d_v
STYLE_DIM = 24   # style_dim
K1, K2 = 9, 1    # fft_conv1d_kernel_size
PAD1 = (K1 - 1) // 2
LN_EPS = 1e-5
INV_TEMP = 1.0 / float(D_K ** 0.5)   # ScaledDotProductAttention temperature = sqrt(d_k)


# ------------------------------ fused Pallas kernel ------------------------------
def fft_block_kernel(x_ref, pmask_ref, amask_ref, style_ref,
                     wqkv_ref, bqkv_ref, wo_ref, bo_ref,
                     ws_ref, bs_ref, w1_ref, b1_ref, w2_ref, b2_ref,
                     out_ref, attn_ref):
    f32 = jnp.float32
    x = x_ref[...].astype(f32)                       # (B*T, D_MODEL)
    keep = 1.0 - pmask_ref[...].astype(f32)          # (B*T, 1); mask==1 -> zero out
    amask = amask_ref[...]                           # (B, T, T); 1.0 == masked
    style = style_ref[...].astype(f32)               # (B, STYLE_DIM)

    # ---- style affine (x-independent): gamma/beta for both SALN layers, once ----
    aff0 = jnp.dot(style, ws_ref[0], preferred_element_type=f32) + bs_ref[0]   # (B, 2*D)
    aff1 = jnp.dot(style, ws_ref[1], preferred_element_type=f32) + bs_ref[1]   # (B, 2*D)

    def per_row(a):                                  # (B, C) -> (B*T, C), row b repeated T times
        return jnp.concatenate(
            [jnp.broadcast_to(a[b:b + 1, :], (T, a.shape[-1])) for b in range(B)], axis=0)

    aff0_r = per_row(aff0)
    aff1_r = per_row(aff1)
    g0, be0 = aff0_r[:, :D_MODEL], aff0_r[:, D_MODEL:]
    g1, be1 = aff1_r[:, :D_MODEL], aff1_r[:, D_MODEL:]

    def saln(y, g, be):                              # LayerNorm (no affine) -> style affine -> mask
        mean = jnp.mean(y, axis=-1, keepdims=True)
        var = jnp.mean(jnp.square(y - mean), axis=-1, keepdims=True)   # biased variance
        yn = (y - mean) * jax.lax.rsqrt(var + LN_EPS)
        return (g * yn + be) * keep                  # masked_fill(mask, 0)

    # --------------------------- multi-head self-attention ---------------------------
    qkv = jnp.dot(x, wqkv_ref[...], preferred_element_type=f32) + bqkv_ref[...]  # (B*T, 3*H*Dk)
    HDK = N_HEAD * D_K
    HDV = N_HEAD * D_V
    q = qkv[:, :HDK]
    k = qkv[:, HDK:2 * HDK]
    v = qkv[:, 2 * HDK:2 * HDK + HDV]

    ctx_rows = []
    for b in range(B):                               # static unroll: B, N_HEAD are tiny
        m_b = amask[b]                               # (T, T)
        head_ctx = []
        for h in range(N_HEAD):
            qh = q[b * T:(b + 1) * T, h * D_K:(h + 1) * D_K]
            kh = k[b * T:(b + 1) * T, h * D_K:(h + 1) * D_K]
            vh = v[b * T:(b + 1) * T, h * D_V:(h + 1) * D_V]
            s = jnp.dot(qh, kh.T, preferred_element_type=f32) * INV_TEMP
            s = jnp.where(m_b > 0.5, -1e30, s)       # masked_fill(mask, -inf)
            s = s - jnp.max(s, axis=-1, keepdims=True)
            e = jnp.exp(s)
            a = e * pl.reciprocal(jnp.sum(e, axis=-1, keepdims=True), approx=True)
            attn_ref[h * B + b] = a                  # head-major == torch mask.repeat(n_head,1,1)
            head_ctx.append(jnp.dot(a, vh, preferred_element_type=f32))
        ctx_rows.append(jnp.concatenate(head_ctx, axis=-1))
    ctx = jnp.concatenate(ctx_rows, axis=0)          # (B*T, H*D_V)

    attn_out = jnp.dot(ctx, wo_ref[...], preferred_element_type=f32) + bo_ref[...] + x
    h0 = saln(attn_out, g0, be0)                     # SALN_0 + masked_fill(mask, 0)

    # --------------- position-wise FFN: conv1d(k=9) -> Mish -> conv1d(k=1) ---------------
    zpad = jnp.zeros((PAD1, D_MODEL), f32)
    col_rows = []
    for b in range(B):                               # im2col with in-kernel zero padding
        hb = h0[b * T:(b + 1) * T, :]
        hp = jnp.concatenate([zpad, hb, zpad], axis=0)                          # (T+2*PAD1, D)
        col_rows.append(jnp.concatenate([hp[kk:kk + T, :] for kk in range(K1)], axis=-1))
    cols = jnp.concatenate(col_rows, axis=0)         # (B*T, K1*D_MODEL)

    z1 = jnp.dot(cols, w1_ref[...], preferred_element_type=f32) + b1_ref[...]   # (B*T, D_INNER)
    sp = jnp.maximum(z1, 0.0) + jnp.log1p(jnp.exp(-jnp.abs(z1)))                # stable softplus
    act = z1 * jnp.tanh(sp)                                                     # Mish
    z2 = jnp.dot(act, w2_ref[...], preferred_element_type=f32) + b2_ref[...] + h0   # + residual

    out_ref[...] = saln(z2, g1, be1).astype(out_ref.dtype)        # SALN_1 + masked_fill(mask, 0)


# ------------------------------ pallas_call glue ------------------------------
def _spec(shape):
    n = len(shape)
    return pl.BlockSpec(shape, lambda i, n=n: (0,) * n)


_IN_SPECS = [
    _spec((B * T, D_MODEL)),                 # x (flattened)
    _spec((B * T, 1)),                       # padding mask (1.0 == masked)
    _spec((B, T, T)),                        # attention mask (1.0 == masked)
    _spec((B, STYLE_DIM)),                   # style vector
    _spec((D_MODEL, 3 * N_HEAD * D_K)),      # wqkv
    _spec((1, 3 * N_HEAD * D_K)),            # bqkv
    _spec((N_HEAD * D_V, D_MODEL)),          # wo
    _spec((1, D_MODEL)),                     # bo
    _spec((2, STYLE_DIM, 2 * D_MODEL)),      # ws (SALN_0, SALN_1 stacked)
    _spec((2, 1, 2 * D_MODEL)),              # bs
    _spec((K1 * D_MODEL, D_INNER)),          # w1 (im2col-flattened conv weight)
    _spec((1, D_INNER)),                     # b1
    _spec((D_INNER, D_MODEL)),               # w2 (k=1 conv == plain matrix)
    _spec((1, D_MODEL)),                     # b2
]
_OUT_SPECS = [_spec((B * T, D_MODEL)), _spec((N_HEAD * B, T, T))]


@jax.jit
def fft_block_forward(x, style_vector, mask, slf_attn_mask, pp):
    """Full FFTBlock forward.  x:(B,T,D), style:(B,style_dim), mask:(B,T) bool,
    slf_attn_mask:(B,T,T) bool.  Returns (output (B,T,D), attn (n_head*B, T, T))."""
    x_flat = x.astype(jnp.float32).reshape(B * T, D_MODEL)
    mask_f = mask.astype(jnp.float32).reshape(B * T, 1)
    amask_f = slf_attn_mask.astype(jnp.float32)
    style_f = style_vector.astype(jnp.float32)

    out_flat, attn = pl.pallas_call(
        fft_block_kernel,
        out_shape=(jax.ShapeDtypeStruct((B * T, D_MODEL), jnp.float32),
                   jax.ShapeDtypeStruct((N_HEAD * B, T, T), jnp.float32)),
        grid=(1,),
        in_specs=_IN_SPECS,
        out_specs=_OUT_SPECS,
        compiler_params=pltpu.CompilerParams(dimension_semantics=("arbitrary",)),
    )(x_flat, mask_f, amask_f, style_f,
      pp["wqkv"], pp["bqkv"], pp["wo"], pp["bo"],
      pp["ws"], pp["bs"], pp["w1"], pp["b1"], pp["w2"], pp["b2"])

    return out_flat.reshape(B, T, D_MODEL), attn


# ------------------------------ parameter init -------------------------------
def init_params(key):
    ks = jax.random.split(key, 14)

    def nrm(k, shape, scale=0.1):
        return (scale * jax.random.normal(k, shape)).astype(jnp.float32)

    p = {
        # MultiHeadAttention (linear weights stored as (in, out))
        "wq": nrm(ks[0], (D_MODEL, N_HEAD * D_K)),
        "bq": nrm(ks[1], (1, N_HEAD * D_K), 0.01),
        "wk": nrm(ks[2], (D_MODEL, N_HEAD * D_K)),
        "bk": nrm(ks[3], (1, N_HEAD * D_K), 0.01),
        "wv": nrm(ks[4], (D_MODEL, N_HEAD * D_V)),
        "bv": nrm(ks[5], (1, N_HEAD * D_V), 0.01),
        "wo": nrm(ks[6], (N_HEAD * D_V, D_MODEL)),
        "bo": nrm(ks[7], (1, D_MODEL), 0.01),
        # StyleAdaptiveLayerNorm 0/1: style affine (style_dim -> 2*d_model),
        # bias init: gamma half = 1, beta half = 0 (as in the PyTorch __init__)
        "ws0": nrm(ks[8], (STYLE_DIM, 2 * D_MODEL)),
        "bs0": jnp.concatenate([jnp.ones((1, D_MODEL), jnp.float32),
                                jnp.zeros((1, D_MODEL), jnp.float32)], axis=-1),
        "ws1": nrm(ks[9], (STYLE_DIM, 2 * D_MODEL)),
        "bs1": jnp.concatenate([jnp.ones((1, D_MODEL), jnp.float32),
                                jnp.zeros((1, D_MODEL), jnp.float32)], axis=-1),
        # PositionwiseFeedForward: ConvNorm weights as (K, C_in, C_out)
        "w1": nrm(ks[10], (K1, D_MODEL, D_INNER)),
        "b1": nrm(ks[11], (1, D_INNER), 0.01),
        "w2": nrm(ks[12], (D_INNER, D_MODEL)),      # K2 == 1 -> plain matrix
        "b2": nrm(ks[13], (1, D_MODEL), 0.01),
    }
    return p


def pack_params(p):
    """Pack per-module parameters into the fused-kernel operand layout (done once)."""
    return {
        "wqkv": jnp.concatenate([p["wq"], p["wk"], p["wv"]], axis=-1),    # (D, 3*H*Dk)
        "bqkv": jnp.concatenate([p["bq"], p["bk"], p["bv"]], axis=-1),    # (1, 3*H*Dk)
        "wo": p["wo"], "bo": p["bo"],
        "ws": jnp.stack([p["ws0"], p["ws1"]]),                            # (2, style, 2*D)
        "bs": jnp.stack([p["bs0"], p["bs1"]]),                            # (2, 1, 2*D)
        "w1": p["w1"].reshape(K1 * D_MODEL, D_INNER),                     # kk-major / c_in-minor
        "b1": p["b1"], "w2": p["w2"], "b2": p["b2"],
    }


# ----------------------------------- main ------------------------------------
if __name__ == "__main__":
    key = jax.random.PRNGKey(0)
    k_x, k_s, k_p = jax.random.split(key, 3)

    x = jax.random.normal(k_x, (B, T, D_MODEL), jnp.float32)
    style_vector = jax.random.normal(k_s, (B, STYLE_DIM), jnp.float32)

    # padding mask: True == padded position
    lengths = jnp.array([T, 5], dtype=jnp.int32)
    mask = jnp.arange(T)[None, :] >= lengths[:, None]                  # (B, T) bool
    slf_attn_mask = jnp.broadcast_to(mask[:, None, :], (B, T, T))      # (B, T, T) bool

    params = pack_params(init_params(k_p))

    out, attn = fft_block_forward(x, style_vector, mask, slf_attn_mask, params)
    out = jax.block_until_ready(out)
    attn = jax.block_until_ready(attn)

    assert out.shape == (B, T, D_MODEL)
    assert attn.shape == (N_HEAD * B, T, T)
    assert bool(jnp.all(jnp.isfinite(out)))
    # masked positions must be exactly zero
    assert bool(jnp.all(jnp.where(mask[:, :, None], out == 0.0, True)))

    print("KERNEL_OK")
</pallas_src>

<mosaic_0001>
module attributes {stable_mosaic.version = 11 : i64} {
  func.func @fft_block_kernel(%arg0: i32, %arg1: memref<16x32xf32, #tpu.memory_space<vmem>>, %arg2: memref<16x1xf32, #tpu.memory_space<vmem>>, %arg3: memref<2x8x8xf32, #tpu.memory_space<vmem>>, %arg4: memref<2x24xf32, #tpu.memory_space<vmem>>, %arg5: memref<32x96xf32, #tpu.memory_space<vmem>>, %arg6: memref<1x96xf32, #tpu.memory_space<vmem>>, %arg7: memref<32x32xf32, #tpu.memory_space<vmem>>, %arg8: memref<1x32xf32, #tpu.memory_space<vmem>>, %arg9: memref<2x24x64xf32, #tpu.memory_space<vmem>>, %arg10: memref<2x1x64xf32, #tpu.memory_space<vmem>>, %arg11: memref<288x64xf32, #tpu.memory_space<vmem>>, %arg12: memref<1x64xf32, #tpu.memory_space<vmem>>, %arg13: memref<64x32xf32, #tpu.memory_space<vmem>>, %arg14: memref<1x32xf32, #tpu.memory_space<vmem>>, %arg15: memref<16x32xf32, #tpu.memory_space<vmem>>, %arg16: memref<4x8x8xf32, #tpu.memory_space<vmem>>) attributes {dimension_semantics = [#tpu.dimension_semantics<arbitrary>], iteration_bounds = array<i64: 1>, scalar_prefetch = 0 : i64, scratch_operands = 0 : i64, tpu.core_type = #tpu.core_type<tc>, window_params = [{pipeline_mode = #tpu.pipeline_mode<synchronous>, transform_indices = @transform_0, window_bounds = array<i64: 16, 32>}, {pipeline_mode = #tpu.pipeline_mode<synchronous>, transform_indices = @transform_1, window_bounds = array<i64: 16, 1>}, {pipeline_mode = #tpu.pipeline_mode<synchronous>, transform_indices = @transform_2, window_bounds = array<i64: 2, 8, 8>}, {pipeline_mode = #tpu.pipeline_mode<synchronous>, transform_indices = @transform_3, window_bounds = array<i64: 2, 24>}, {pipeline_mode = #tpu.pipeline_mode<synchronous>, transform_indices = @transform_4, window_bounds = array<i64: 32, 96>}, {pipeline_mode = #tpu.pipeline_mode<synchronous>, transform_indices = @transform_5, window_bounds = array<i64: 1, 96>}, {pipeline_mode = #tpu.pipeline_mode<synchronous>, transform_indices = @transform_6, window_bounds = array<i64: 32, 32>}, {pipeline_mode = #tpu.pipeline_mode<synchronous>, transform_indices = @transform_7, window_bounds = array<i64: 1, 32>}, {pipeline_mode = #tpu.pipeline_mode<synchronous>, transform_indices = @transform_8, window_bounds = array<i64: 2, 24, 64>}, {pipeline_mode = #tpu.pipeline_mode<synchronous>, transform_indices = @transform_9, window_bounds = array<i64: 2, 1, 64>}, {pipeline_mode = #tpu.pipeline_mode<synchronous>, transform_indices = @transform_10, window_bounds = array<i64: 288, 64>}, {pipeline_mode = #tpu.pipeline_mode<synchronous>, transform_indices = @transform_11, window_bounds = array<i64: 1, 64>}, {pipeline_mode = #tpu.pipeline_mode<synchronous>, transform_indices = @transform_12, window_bounds = array<i64: 64, 32>}, {pipeline_mode = #tpu.pipeline_mode<synchronous>, transform_indices = @transform_13, window_bounds = array<i64: 1, 32>}, {pipeline_mode = #tpu.pipeline_mode<synchronous>, transform_indices = @transform_14, window_bounds = array<i64: 16, 32>}, {pipeline_mode = #tpu.pipeline_mode<synchronous>, transform_indices = @transform_15, window_bounds = array<i64: 4, 8, 8>}]} {
    %c0 = arith.constant 0 : index
    %c0_0 = arith.constant 0 : index
    %0 = vector.load %arg1[%c0, %c0_0] : memref<16x32xf32, #tpu.memory_space<vmem>>, vector<16x32xf32>
    %c0_1 = arith.constant 0 : index
    %c0_2 = arith.constant 0 : index
    %1 = vector.load %arg2[%c0_1, %c0_2] : memref<16x1xf32, #tpu.memory_space<vmem>>, vector<16x1xf32>
    %cst = arith.constant 1.000000e+00 : f32
    %2 = vector.broadcast %cst : f32 to vector<16x1xf32>
    %3 = arith.subf %2, %1 : vector<16x1xf32>
    %c0_3 = arith.constant 0 : index
    %c0_4 = arith.constant 0 : index
    %c0_5 = arith.constant 0 : index
    %4 = vector.load %arg3[%c0_3, %c0_4, %c0_5] : memref<2x8x8xf32, #tpu.memory_space<vmem>>, vector<2x8x8xf32>
    %c0_6 = arith.constant 0 : index
    %c0_7 = arith.constant 0 : index
    %5 = vector.load %arg4[%c0_6, %c0_7] : memref<2x24xf32, #tpu.memory_space<vmem>>, vector<2x24xf32>
    %c0_8 = arith.constant 0 : index
    %c0_9 = arith.constant 0 : index
    %c0_10 = arith.constant 0 : index
    %6 = vector.load %arg9[%c0_8, %c0_9, %c0_10] : memref<2x24x64xf32, #tpu.memory_space<vmem>>, vector<1x24x64xf32>
    %7 = vector.shape_cast %6 : vector<1x24x64xf32> to vector<24x64xf32>
    %cst_11 = arith.constant dense<0.000000e+00> : vector<2x64xf32>
    %8 = tpu.matmul %5, %7, %cst_11 {dimension_numbers = #tpu.dot_dimension_numbers<[1], [0], [0], [1], [0, 0, 1, 1], [], []>} : vector<2x24xf32>, vector<24x64xf32>, vector<2x64xf32> -> vector<2x64xf32>
    %c0_12 = arith.constant 0 : index
    %c0_13 = arith.constant 0 : index
    %c0_14 = arith.constant 0 : index
    %9 = vector.load %arg10[%c0_12, %c0_13, %c0_14] : memref<2x1x64xf32, #tpu.memory_space<vmem>>, vector<1x1x64xf32>
    %10 = vector.shape_cast %9 : vector<1x1x64xf32> to vector<1x64xf32>
    %11 = vector.broadcast %10 : vector<1x64xf32> to vector<2x64xf32>
    %12 = arith.addf %8, %11 : vector<2x64xf32>
    %c1 = arith.constant 1 : index
    %c0_15 = arith.constant 0 : index
    %c0_16 = arith.constant 0 : index
    %13 = vector.load %arg9[%c1, %c0_15, %c0_16] : memref<2x24x64xf32, #tpu.memory_space<vmem>>, vector<1x24x64xf32>
    %14 = vector.shape_cast %13 : vector<1x24x64xf32> to vector<24x64xf32>
    %cst_17 = arith.constant dense<0.000000e+00> : vector<2x64xf32>
    %15 = tpu.matmul %5, %14, %cst_17 {dimension_numbers = #tpu.dot_dimension_numbers<[1], [0], [0], [1], [0, 0, 1, 1], [], []>} : vector<2x24xf32>, vector<24x64xf32>, vector<2x64xf32> -> vector<2x64xf32>
    %c1_18 = arith.constant 1 : index
    %c0_19 = arith.constant 0 : index
    %c0_20 = arith.constant 0 : index
    %16 = vector.load %arg10[%c1_18, %c0_19, %c0_20] : memref<2x1x64xf32, #tpu.memory_space<vmem>>, vector<1x1x64xf32>
    %17 = vector.shape_cast %16 : vector<1x1x64xf32> to vector<1x64xf32>
    %18 = vector.broadcast %17 : vector<1x64xf32> to vector<2x64xf32>
    %19 = arith.addf %15, %18 : vector<2x64xf32>
    %20 = vector.extract_strided_slice %12 {offsets = [0, 0], sizes = [1, 64], strides = [1, 1]} : vector<2x64xf32> to vector<1x64xf32>
    %21 = vector.shape_cast %20 : vector<1x64xf32> to vector<1x64xf32>
    %22 = vector.broadcast %21 : vector<1x64xf32> to vector<8x64xf32>
    %23 = vector.extract_strided_slice %12 {offsets = [1, 0], sizes = [1, 64], strides = [1, 1]} : vector<2x64xf32> to vector<1x64xf32>
    %24 = vector.shape_cast %23 : vector<1x64xf32> to vector<1x64xf32>
    %25 = vector.broadcast %24 : vector<1x64xf32> to vector<8x64xf32>
    %26 = tpu.concatenate %22, %25 in 0 : vector<8x64xf32>, vector<8x64xf32> -> vector<16x64xf32>
    %27 = vector.extract_strided_slice %19 {offsets = [0, 0], sizes = [1, 64], strides = [1, 1]} : vector<2x64xf32> to vector<1x64xf32>
    %28 = vector.shape_cast %27 : vector<1x64xf32> to vector<1x64xf32>
    %29 = vector.broadcast %28 : vector<1x64xf32> to vector<8x64xf32>
    %30 = vector.extract_strided_slice %19 {offsets = [1, 0], sizes = [1, 64], strides = [1, 1]} : vector<2x64xf32> to vector<1x64xf32>
    %31 = vector.shape_cast %30 : vector<1x64xf32> to vector<1x64xf32>
    %32 = vector.broadcast %31 : vector<1x64xf32> to vector<8x64xf32>
    %33 = tpu.concatenate %29, %32 in 0 : vector<8x64xf32>, vector<8x64xf32> -> vector<16x64xf32>
    %34 = vector.extract_strided_slice %26 {offsets = [0, 0], sizes = [16, 32], strides = [1, 1]} : vector<16x64xf32> to vector<16x32xf32>
    %35 = vector.extract_strided_slice %26 {offsets = [0, 32], sizes = [16, 32], strides = [1, 1]} : vector<16x64xf32> to vector<16x32xf32>
    %36 = vector.extract_strided_slice %33 {offsets = [0, 0], sizes = [16, 32], strides = [1, 1]} : vector<16x64xf32> to vector<16x32xf32>
    %37 = vector.extract_strided_slice %33 {offsets = [0, 32], sizes = [16, 32], strides = [1, 1]} : vector<16x64xf32> to vector<16x32xf32>
    %c0_21 = arith.constant 0 : index
    %c0_22 = arith.constant 0 : index
    %38 = vector.load %arg5[%c0_21, %c0_22] : memref<32x96xf32, #tpu.memory_space<vmem>>, vector<32x96xf32>
    %cst_23 = arith.constant dense<0.000000e+00> : vector<16x96xf32>
    %39 = tpu.matmul %0, %38, %cst_23 {dimension_numbers = #tpu.dot_dimension_numbers<[1], [0], [0], [1], [0, 0, 1, 1], [], []>} : vector<16x32xf32>, vector<32x96xf32>, vector<16x96xf32> -> vector<16x96xf32>
    %c0_24 = arith.constant 0 : index
    %c0_25 = arith.constant 0 : index
    %40 = vector.load %arg6[%c0_24, %c0_25] : memref<1x96xf32, #tpu.memory_space<vmem>>, vector<1x96xf32>
    %41 = vector.broadcast %40 : vector<1x96xf32> to vector<16x96xf32>
    %42 = arith.addf %39, %41 : vector<16x96xf32>
    %43 = vector.extract_strided_slice %42 {offsets = [0, 0], sizes = [16, 32], strides = [1, 1]} : vector<16x96xf32> to vector<16x32xf32>
    %44 = vector.extract_strided_slice %42 {offsets = [0, 32], sizes = [16, 32], strides = [1, 1]} : vector<16x96xf32> to vector<16x32xf32>
    %45 = vector.extract_strided_slice %42 {offsets = [0, 64], sizes = [16, 32], strides = [1, 1]} : vector<16x96xf32> to vector<16x32xf32>
    %46 = vector.extract_strided_slice %4 {offsets = [0, 0, 0], sizes = [1, 8, 8], strides = [1, 1, 1]} : vector<2x8x8xf32> to vector<1x8x8xf32>
    %47 = vector.shape_cast %46 : vector<1x8x8xf32> to vector<8x8xf32>
    %48 = vector.extract_strided_slice %43 {offsets = [0, 0], sizes = [8, 16], strides = [1, 1]} : vector<16x32xf32> to vector<8x16xf32>
    %49 = vector.extract_strided_slice %44 {offsets = [0, 0], sizes = [8, 16], strides = [1, 1]} : vector<16x32xf32> to vector<8x16xf32>
    %50 = vector.extract_strided_slice %45 {offsets = [0, 0], sizes = [8, 16], strides = [1, 1]} : vector<16x32xf32> to vector<8x16xf32>
    %51 = tpu.transpose %49, [1, 0] : vector<8x16xf32> -> vector<16x8xf32>
    %cst_26 = arith.constant dense<0.000000e+00> : vector<8x8xf32>
    %52 = tpu.matmul %48, %51, %cst_26 {dimension_numbers = #tpu.dot_dimension_numbers<[1], [0], [0], [1], [0, 0, 1, 1], [], []>} : vector<8x16xf32>, vector<16x8xf32>, vector<8x8xf32> -> vector<8x8xf32>
    %cst_27 = arith.constant 2.500000e-01 : f32
    %53 = vector.broadcast %cst_27 : f32 to vector<8x8xf32>
    %54 = arith.mulf %52, %53 : vector<8x8xf32>
    %cst_28 = arith.constant 5.000000e-01 : f32
    %55 = vector.broadcast %cst_28 : f32 to vector<8x8xf32>
    %56 = arith.cmpf ogt, %47, %55 : vector<8x8xf32>
    %cst_29 = arith.constant -1.000000e+30 : f32
    %57 = vector.broadcast %cst_29 : f32 to vector<8x8xf32>
    %58 = arith.select %56, %57, %54 : vector<8x8xi1>, vector<8x8xf32>
    %cst_30 = arith.constant dense<0xFF800000> : vector<8xf32>
    %59 = vector.multi_reduction <maximumf>, %58, %cst_30 [1] : vector<8x8xf32> to vector<8xf32>
    %60 = vector.shape_cast %59 : vector<8xf32> to vector<8x1xf32>
    %61 = vector.broadcast %60 : vector<8x1xf32> to vector<8x8xf32>
    %62 = arith.subf %58, %61 : vector<8x8xf32>
    %63 = math.exp %62 : vector<8x8xf32>
    %cst_31 = arith.constant dense<0.000000e+00> : vector<8xf32>
    %64 = vector.multi_reduction <add>, %63, %cst_31 [1] : vector<8x8xf32> to vector<8xf32>
    %65 = vector.shape_cast %64 : vector<8xf32> to vector<8x1xf32>
    %66 = tpu.reciprocal %65 {approx = true} : vector<8x1xf32> -> vector<8x1xf32>
    %67 = vector.broadcast %66 : vector<8x1xf32> to vector<8x8xf32>
    %68 = arith.mulf %63, %67 : vector<8x8xf32>
    %c0_32 = arith.constant 0 : index
    %c0_33 = arith.constant 0 : index
    %c0_34 = arith.constant 0 : index
    %69 = vector.load %arg16[%c0_32, %c0_33, %c0_34] : memref<4x8x8xf32, #tpu.memory_space<vmem>>, vector<1x8x8xf32>
    %70 = vector.shape_cast %69 : vector<1x8x8xf32> to vector<8x8xf32>
    %71 = vector.shape_cast %68 : vector<8x8xf32> to vector<1x8x8xf32>
    tpu.vector_store %arg16[%c0_32, %c0_33, %c0_34], %71 {strides = array<i32>} : memref<4x8x8xf32, #tpu.memory_space<vmem>>, vector<1x8x8xf32>,
    %cst_35 = arith.constant dense<0.000000e+00> : vector<8x16xf32>
    %72 = tpu.matmul %68, %50, %cst_35 {dimension_numbers = #tpu.dot_dimension_numbers<[1], [0], [0], [1], [0, 0, 1, 1], [], []>} : vector<8x8xf32>, vector<8x16xf32>, vector<8x16xf32> -> vector<8x16xf32>
    %73 = vector.extract_strided_slice %43 {offsets = [0, 16], sizes = [8, 16], strides = [1, 1]} : vector<16x32xf32> to vector<8x16xf32>
    %74 = vector.extract_strided_slice %44 {offsets = [0, 16], sizes = [8, 16], strides = [1, 1]} : vector<16x32xf32> to vector<8x16xf32>
    %75 = vector.extract_strided_slice %45 {offsets = [0, 16], sizes = [8, 16], strides = [1, 1]} : vector<16x32xf32> to vector<8x16xf32>
    %76 = tpu.transpose %74, [1, 0] : vector<8x16xf32> -> vector<16x8xf32>
    %cst_36 = arith.constant dense<0.000000e+00> : vector<8x8xf32>
    %77 = tpu.matmul %73, %76, %cst_36 {dimension_numbers = #tpu.dot_dimension_numbers<[1], [0], [0], [1], [0, 0, 1, 1], [], []>} : vector<8x16xf32>, vector<16x8xf32>, vector<8x8xf32> -> vector<8x8xf32>
    %cst_37 = arith.constant 2.500000e-01 : f32
    %78 = vector.broadcast %cst_37 : f32 to vector<8x8xf32>
    %79 = arith.mulf %77, %78 : vector<8x8xf32>
    %cst_38 = arith.constant 5.000000e-01 : f32
    %80 = vector.broadcast %cst_38 : f32 to vector<8x8xf32>
    %81 = arith.cmpf ogt, %47, %80 : vector<8x8xf32>
    %cst_39 = arith.constant -1.000000e+30 : f32
    %82 = vector.broadcast %cst_39 : f32 to vector<8x8xf32>
    %83 = arith.select %81, %82, %79 : vector<8x8xi1>, vector<8x8xf32>
    %cst_40 = arith.constant dense<0xFF800000> : vector<8xf32>
    %84 = vector.multi_reduction <maximumf>, %83, %cst_40 [1] : vector<8x8xf32> to vector<8xf32>
    %85 = vector.shape_cast %84 : vector<8xf32> to vector<8x1xf32>
    %86 = vector.broadcast %85 : vector<8x1xf32> to vector<8x8xf32>
    %87 = arith.subf %83, %86 : vector<8x8xf32>
    %88 = math.exp %87 : vector<8x8xf32>
    %cst_41 = arith.constant dense<0.000000e+00> : vector<8xf32>
    %89 = vector.multi_reduction <add>, %88, %cst_41 [1] : vector<8x8xf32> to vector<8xf32>
    %90 = vector.shape_cast %89 : vector<8xf32> to vector<8x1xf32>
    %91 = tpu.reciprocal %90 {approx = true} : vector<8x1xf32> -> vector<8x1xf32>
    %92 = vector.broadcast %91 : vector<8x1xf32> to vector<8x8xf32>
    %93 = arith.mulf %88, %92 : vector<8x8xf32>
    %c2 = arith.constant 2 : index
    %c0_42 = arith.constant 0 : index
    %c0_43 = arith.constant 0 : index
    %94 = vector.load %arg16[%c2, %c0_42, %c0_43] : memref<4x8x8xf32, #tpu.memory_space<vmem>>, vector<1x8x8xf32>
    %95 = vector.shape_cast %94 : vector<1x8x8xf32> to vector<8x8xf32>
    %96 = vector.shape_cast %93 : vector<8x8xf32> to vector<1x8x8xf32>
    tpu.vector_store %arg16[%c2, %c0_42, %c0_43], %96 {strides = array<i32>} : memref<4x8x8xf32, #tpu.memory_space<vmem>>, vector<1x8x8xf32>,
    %cst_44 = arith.constant dense<0.000000e+00> : vector<8x16xf32>
    %97 = tpu.matmul %93, %75, %cst_44 {dimension_numbers = #tpu.dot_dimension_numbers<[1], [0], [0], [1], [0, 0, 1, 1], [], []>} : vector<8x8xf32>, vector<8x16xf32>, vector<8x16xf32> -> vector<8x16xf32>
    %98 = tpu.concatenate %72, %97 in 1 : vector<8x16xf32>, vector<8x16xf32> -> vector<8x32xf32>
    %99 = vector.extract_strided_slice %4 {offsets = [1, 0, 0], sizes = [1, 8, 8], strides = [1, 1, 1]} : vector<2x8x8xf32> to vector<1x8x8xf32>
    %100 = vector.shape_cast %99 : vector<1x8x8xf32> to vector<8x8xf32>
    %101 = vector.extract_strided_slice %43 {offsets = [8, 0], sizes = [8, 16], strides = [1, 1]} : vector<16x32xf32> to vector<8x16xf32>
    %102 = vector.extract_strided_slice %44 {offsets = [8, 0], sizes = [8, 16], strides = [1, 1]} : vector<16x32xf32> to vector<8x16xf32>
    %103 = vector.extract_strided_slice %45 {offsets = [8, 0], sizes = [8, 16], strides = [1, 1]} : vector<16x32xf32> to vector<8x16xf32>
    %104 = tpu.transpose %102, [1, 0] : vector<8x16xf32> -> vector<16x8xf32>
    %cst_45 = arith.constant dense<0.000000e+00> : vector<8x8xf32>
    %105 = tpu.matmul %101, %104, %cst_45 {dimension_numbers = #tpu.dot_dimension_numbers<[1], [0], [0], [1], [0, 0, 1, 1], [], []>} : vector<8x16xf32>, vector<16x8xf32>, vector<8x8xf32> -> vector<8x8xf32>
    %cst_46 = arith.constant 2.500000e-01 : f32
    %106 = vector.broadcast %cst_46 : f32 to vector<8x8xf32>
    %107 = arith.mulf %105, %106 : vector<8x8xf32>
    %cst_47 = arith.constant 5.000000e-01 : f32
    %108 = vector.broadcast %cst_47 : f32 to vector<8x8xf32>
    %109 = arith.cmpf ogt, %100, %108 : vector<8x8xf32>
    %cst_48 = arith.constant -1.000000e+30 : f32
    %110 = vector.broadcast %cst_48 : f32 to vector<8x8xf32>
    %111 = arith.select %109, %110, %107 : vector<8x8xi1>, vector<8x8xf32>
    %cst_49 = arith.constant dense<0xFF800000> : vector<8xf32>
    %112 = vector.multi_reduction <maximumf>, %111, %cst_49 [1] : vector<8x8xf32> to vector<8xf32>
    %113 = vector.shape_cast %112 : vector<8xf32> to vector<8x1xf32>
    %114 = vector.broadcast %113 : vector<8x1xf32> to vector<8x8xf32>
    %115 = arith.subf %111, %114 : vector<8x8xf32>
    %116 = math.exp %115 : vector<8x8xf32>
    %cst_50 = arith.constant dense<0.000000e+00> : vector<8xf32>
    %117 = vector.multi_reduction <add>, %116, %cst_50 [1] : vector<8x8xf32> to vector<8xf32>
    %118 = vector.shape_cast %117 : vector<8xf32> to vector<8x1xf32>
    %119 = tpu.reciprocal %118 {approx = true} : vector<8x1xf32> -> vector<8x1xf32>
    %120 = vector.broadcast %119 : vector<8x1xf32> to vector<8x8xf32>
    %121 = arith.mulf %116, %120 : vector<8x8xf32>
    %c1_51 = arith.constant 1 : index
    %c0_52 = arith.constant 0 : index
    %c0_53 = arith.constant 0 : index
    %122 = vector.load %arg16[%c1_51, %c0_52, %c0_53] : memref<4x8x8xf32, #tpu.memory_space<vmem>>, vector<1x8x8xf32>
    %123 = vector.shape_cast %122 : vector<1x8x8xf32> to vector<8x8xf32>
    %124 = vector.shape_cast %121 : vector<8x8xf32> to vector<1x8x8xf32>
    tpu.vector_store %arg16[%c1_51, %c0_52, %c0_53], %124 {strides = array<i32>} : memref<4x8x8xf32, #tpu.memory_space<vmem>>, vector<1x8x8xf32>,
    %cst_54 = arith.constant dense<0.000000e+00> : vector<8x16xf32>
    %125 = tpu.matmul %121, %103, %cst_54 {dimension_numbers = #tpu.dot_dimension_numbers<[1], [0], [0], [1], [0, 0, 1, 1], [], []>} : vector<8x8xf32>, vector<8x16xf32>, vector<8x16xf32> -> vector<8x16xf32>
    %126 = vector.extract_strided_slice %43 {offsets = [8, 16], sizes = [8, 16], strides = [1, 1]} : vector<16x32xf32> to vector<8x16xf32>
    %127 = vector.extract_strided_slice %44 {offsets = [8, 16], sizes = [8, 16], strides = [1, 1]} : vector<16x32xf32> to vector<8x16xf32>
    %128 = vector.extract_strided_slice %45 {offsets = [8, 16], sizes = [8, 16], strides = [1, 1]} : vector<16x32xf32> to vector<8x16xf32>
    %129 = tpu.transpose %127, [1, 0] : vector<8x16xf32> -> vector<16x8xf32>
    %cst_55 = arith.constant dense<0.000000e+00> : vector<8x8xf32>
    %130 = tpu.matmul %126, %129, %cst_55 {dimension_numbers = #tpu.dot_dimension_numbers<[1], [0], [0], [1], [0, 0, 1, 1], [], []>} : vector<8x16xf32>, vector<16x8xf32>, vector<8x8xf32> -> vector<8x8xf32>
    %cst_56 = arith.constant 2.500000e-01 : f32
    %131 = vector.broadcast %cst_56 : f32 to vector<8x8xf32>
    %132 = arith.mulf %130, %131 : vector<8x8xf32>
    %cst_57 = arith.constant 5.000000e-01 : f32
    %133 = vector.broadcast %cst_57 : f32 to vector<8x8xf32>
    %134 = arith.cmpf ogt, %100, %133 : vector<8x8xf32>
    %cst_58 = arith.constant -1.000000e+30 : f32
    %135 = vector.broadcast %cst_58 : f32 to vector<8x8xf32>
    %136 = arith.select %134, %135, %132 : vector<8x8xi1>, vector<8x8xf32>
    %cst_59 = arith.constant dense<0xFF800000> : vector<8xf32>
    %137 = vector.multi_reduction <maximumf>, %136, %cst_59 [1] : vector<8x8xf32> to vector<8xf32>
    %138 = vector.shape_cast %137 : vector<8xf32> to vector<8x1xf32>
    %139 = vector.broadcast %138 : vector<8x1xf32> to vector<8x8xf32>
    %140 = arith.subf %136, %139 : vector<8x8xf32>
    %141 = math.exp %140 : vector<8x8xf32>
    %cst_60 = arith.constant dense<0.000000e+00> : vector<8xf32>
    %142 = vector.multi_reduction <add>, %141, %cst_60 [1] : vector<8x8xf32> to vector<8xf32>
    %143 = vector.shape_cast %142 : vector<8xf32> to vector<8x1xf32>
    %144 = tpu.reciprocal %143 {approx = true} : vector<8x1xf32> -> vector<8x1xf32>
    %145 = vector.broadcast %144 : vector<8x1xf32> to vector<8x8xf32>
    %146 = arith.mulf %141, %145 : vector<8x8xf32>
    %c3 = arith.constant 3 : index
    %c0_61 = arith.constant 0 : index
    %c0_62 = arith.constant 0 : index
    %147 = vector.load %arg16[%c3, %c0_61, %c0_62] : memref<4x8x8xf32, #tpu.memory_space<vmem>>, vector<1x8x8xf32>
    %148 = vector.shape_cast %147 : vector<1x8x8xf32> to vector<8x8xf32>
    %149 = vector.shape_cast %146 : vector<8x8xf32> to vector<1x8x8xf32>
    tpu.vector_store %arg16[%c3, %c0_61, %c0_62], %149 {strides = array<i32>} : memref<4x8x8xf32, #tpu.memory_space<vmem>>, vector<1x8x8xf32>,
    %cst_63 = arith.constant dense<0.000000e+00> : vector<8x16xf32>
    %150 = tpu.matmul %146, %128, %cst_63 {dimension_numbers = #tpu.dot_dimension_numbers<[1], [0], [0], [1], [0, 0, 1, 1], [], []>} : vector<8x8xf32>, vector<8x16xf32>, vector<8x16xf32> -> vector<8x16xf32>
    %151 = tpu.concatenate %125, %150 in 1 : vector<8x16xf32>, vector<8x16xf32> -> vector<8x32xf32>
    %152 = tpu.concatenate %98, %151 in 0 : vector<8x32xf32>, vector<8x32xf32> -> vector<16x32xf32>
    %c0_64 = arith.constant 0 : index
    %c0_65 = arith.constant 0 : index
    %153 = vector.load %arg7[%c0_64, %c0_65] : memref<32x32xf32, #tpu.memory_space<vmem>>, vector<32x32xf32>
    %cst_66 = arith.constant dense<0.000000e+00> : vector<16x32xf32>
    %154 = tpu.matmul %152, %153, %cst_66 {dimension_numbers = #tpu.dot_dimension_numbers<[1], [0], [0], [1], [0, 0, 1, 1], [], []>} : vector<16x32xf32>, vector<32x32xf32>, vector<16x32xf32> -> vector<16x32xf32>
    %c0_67 = arith.constant 0 : index
    %c0_68 = arith.constant 0 : index
    %155 = vector.load %arg8[%c0_67, %c0_68] : memref<1x32xf32, #tpu.memory_space<vmem>>, vector<1x32xf32>
    %156 = vector.broadcast %155 : vector<1x32xf32> to vector<16x32xf32>
    %157 = arith.addf %154, %156 : vector<16x32xf32>
    %158 = arith.addf %157, %0 : vector<16x32xf32>
    %cst_69 = arith.constant dense<0.000000e+00> : vector<16xf32>
    %159 = vector.multi_reduction <add>, %158, %cst_69 [1] : vector<16x32xf32> to vector<16xf32>
    %160 = vector.shape_cast %159 : vector<16xf32> to vector<16x1xf32>
    %cst_70 = arith.constant 3.200000e+01 : f32
    %161 = vector.broadcast %cst_70 : f32 to vector<16x1xf32>
    %162 = arith.divf %160, %161 : vector<16x1xf32>
    %163 = vector.broadcast %162 : vector<16x1xf32> to vector<16x32xf32>
    %164 = arith.subf %158, %163 : vector<16x32xf32>
    %165 = arith.mulf %164, %164 : vector<16x32xf32>
    %cst_71 = arith.constant dense<0.000000e+00> : vector<16xf32>
    %166 = vector.multi_reduction <add>, %165, %cst_71 [1] : vector<16x32xf32> to vector<16xf32>
    %167 = vector.shape_cast %166 : vector<16xf32> to vector<16x1xf32>
    %cst_72 = arith.constant 3.200000e+01 : f32
    %168 = vector.broadcast %cst_72 : f32 to vector<16x1xf32>
    %169 = arith.divf %167, %168 : vector<16x1xf32>
    %170 = vector.broadcast %162 : vector<16x1xf32> to vector<16x32xf32>
    %171 = arith.subf %158, %170 : vector<16x32xf32>
    %cst_73 = arith.constant 9.99999974E-6 : f32
    %172 = vector.broadcast %cst_73 : f32 to vector<16x1xf32>
    %173 = arith.addf %169, %172 : vector<16x1xf32>
    %174 = math.rsqrt %173 : vector<16x1xf32>
    %175 = vector.broadcast %174 : vector<16x1xf32> to vector<16x32xf32>
    %176 = arith.mulf %171, %175 : vector<16x32xf32>
    %177 = arith.mulf %34, %176 : vector<16x32xf32>
    %178 = arith.addf %177, %35 : vector<16x32xf32>
    %179 = vector.broadcast %3 : vector<16x1xf32> to vector<16x32xf32>
    %180 = arith.mulf %178, %179 : vector<16x32xf32>
    %cst_74 = arith.constant 0.000000e+00 : f32
    %181 = vector.broadcast %cst_74 : f32 to vector<4x32xf32>
    %182 = vector.extract_strided_slice %180 {offsets = [0, 0], sizes = [8, 32], strides = [1, 1]} : vector<16x32xf32> to vector<8x32xf32>
    %183 = tpu.concatenate %181, %182, %181 in 0 : vector<4x32xf32>, vector<8x32xf32>, vector<4x32xf32> -> vector<16x32xf32>
    %184 = vector.extract_strided_slice %183 {offsets = [0, 0], sizes = [8, 32], strides = [1, 1]} : vector<16x32xf32> to vector<8x32xf32>
    %185 = vector.extract_strided_slice %183 {offsets = [1, 0], sizes = [8, 32], strides = [1, 1]} : vector<16x32xf32> to vector<8x32xf32>
    %186 = vector.extract_strided_slice %183 {offsets = [2, 0], sizes = [8, 32], strides = [1, 1]} : vector<16x32xf32> to vector<8x32xf32>
    %187 = vector.extract_strided_slice %183 {offsets = [3, 0], sizes = [8, 32], strides = [1, 1]} : vector<16x32xf32> to vector<8x32xf32>
    %188 = vector.extract_strided_slice %183 {offsets = [4, 0], sizes = [8, 32], strides = [1, 1]} : vector<16x32xf32> to vector<8x32xf32>
    %189 = vector.extract_strided_slice %183 {offsets = [5, 0], sizes = [8, 32], strides = [1, 1]} : vector<16x32xf32> to vector<8x32xf32>
    %190 = vector.extract_strided_slice %183 {offsets = [6, 0], sizes = [8, 32], strides = [1, 1]} : vector<16x32xf32> to vector<8x32xf32>
    %191 = vector.extract_strided_slice %183 {offsets = [7, 0], sizes = [8, 32], strides = [1, 1]} : vector<16x32xf32> to vector<8x32xf32>
    %192 = vector.extract_strided_slice %183 {offsets = [8, 0], sizes = [8, 32], strides = [1, 1]} : vector<16x32xf32> to vector<8x32xf32>
    %193 = tpu.concatenate %184, %185, %186, %187, %188, %189, %190, %191, %192 in 1 : vector<8x32xf32>, vector<8x32xf32>, vector<8x32xf32>, vector<8x32xf32>, vector<8x32xf32>, vector<8x32xf32>, vector<8x32xf32>, vector<8x32xf32>, vector<8x32xf32> -> vector<8x288xf32>
    %194 = vector.extract_strided_slice %180 {offsets = [8, 0], sizes = [8, 32], strides = [1, 1]} : vector<16x32xf32> to vector<8x32xf32>
    %195 = tpu.concatenate %181, %194, %181 in 0 : vector<4x32xf32>, vector<8x32xf32>, vector<4x32xf32> -> vector<16x32xf32>
    %196 = vector.extract_strided_slice %195 {offsets = [0, 0], sizes = [8, 32], strides = [1, 1]} : vector<16x32xf32> to vector<8x32xf32>
    %197 = vector.extract_strided_slice %195 {offsets = [1, 0], sizes = [8, 32], strides = [1, 1]} : vector<16x32xf32> to vector<8x32xf32>
    %198 = vector.extract_strided_slice %195 {offsets = [2, 0], sizes = [8, 32], strides = [1, 1]} : vector<16x32xf32> to vector<8x32xf32>
    %199 = vector.extract_strided_slice %195 {offsets = [3, 0], sizes = [8, 32], strides = [1, 1]} : vector<16x32xf32> to vector<8x32xf32>
    %200 = vector.extract_strided_slice %195 {offsets = [4, 0], sizes = [8, 32], strides = [1, 1]} : vector<16x32xf32> to vector<8x32xf32>
    %201 = vector.extract_strided_slice %195 {offsets = [5, 0], sizes = [8, 32], strides = [1, 1]} : vector<16x32xf32> to vector<8x32xf32>
    %202 = vector.extract_strided_slice %195 {offsets = [6, 0], sizes = [8, 32], strides = [1, 1]} : vector<16x32xf32> to vector<8x32xf32>
    %203 = vector.extract_strided_slice %195 {offsets = [7, 0], sizes = [8, 32], strides = [1, 1]} : vector<16x32xf32> to vector<8x32xf32>
    %204 = vector.extract_strided_slice %195 {offsets = [8, 0], sizes = [8, 32], strides = [1, 1]} : vector<16x32xf32> to vector<8x32xf32>
    %205 = tpu.concatenate %196, %197, %198, %199, %200, %201, %202, %203, %204 in 1 : vector<8x32xf32>, vector<8x32xf32>, vector<8x32xf32>, vector<8x32xf32>, vector<8x32xf32>, vector<8x32xf32>, vector<8x32xf32>, vector<8x32xf32>, vector<8x32xf32> -> vector<8x288xf32>
    %206 = tpu.concatenate %193, %205 in 0 : vector<8x288xf32>, vector<8x288xf32> -> vector<16x288xf32>
    %c0_75 = arith.constant 0 : index
    %c0_76 = arith.constant 0 : index
    %207 = vector.load %arg11[%c0_75, %c0_76] : memref<288x64xf32, #tpu.memory_space<vmem>>, vector<288x64xf32>
    %cst_77 = arith.constant dense<0.000000e+00> : vector<16x64xf32>
    %208 = tpu.matmul %206, %207, %cst_77 {dimension_numbers = #tpu.dot_dimension_numbers<[1], [0], [0], [1], [0, 0, 1, 1], [], []>} : vector<16x288xf32>, vector<288x64xf32>, vector<16x64xf32> -> vector<16x64xf32>
    %c0_78 = arith.constant 0 : index
    %c0_79 = arith.constant 0 : index
    %209 = vector.load %arg12[%c0_78, %c0_79] : memref<1x64xf32, #tpu.memory_space<vmem>>, vector<1x64xf32>
    %210 = vector.broadcast %209 : vector<1x64xf32> to vector<16x64xf32>
    %211 = arith.addf %208, %210 : vector<16x64xf32>
    %cst_80 = arith.constant 0.000000e+00 : f32
    %212 = vector.broadcast %cst_80 : f32 to vector<16x64xf32>
    %213 = arith.maximumf %211, %212 : vector<16x64xf32>
    %214 = math.absf %211 : vector<16x64xf32>
    %cst_81 = arith.constant 0.000000e+00 : f32
    %215 = vector.broadcast %cst_81 : f32 to vector<16x64xf32>
    %216 = arith.subf %215, %214 : vector<16x64xf32>
    %217 = math.exp %216 : vector<16x64xf32>
    %218 = math.log1p %217 : vector<16x64xf32>
    %219 = arith.addf %213, %218 : vector<16x64xf32>
    %220 = math.tanh %219 : vector<16x64xf32>
    %221 = arith.mulf %211, %220 : vector<16x64xf32>
    %c0_82 = arith.constant 0 : index
    %c0_83 = arith.constant 0 : index
    %222 = vector.load %arg13[%c0_82, %c0_83] : memref<64x32xf32, #tpu.memory_space<vmem>>, vector<64x32xf32>
    %cst_84 = arith.constant dense<0.000000e+00> : vector<16x32xf32>
    %223 = tpu.matmul %221, %222, %cst_84 {dimension_numbers = #tpu.dot_dimension_numbers<[1], [0], [0], [1], [0, 0, 1, 1], [], []>} : vector<16x64xf32>, vector<64x32xf32>, vector<16x32xf32> -> vector<16x32xf32>
    %c0_85 = arith.constant 0 : index
    %c0_86 = arith.constant 0 : index
    %224 = vector.load %arg14[%c0_85, %c0_86] : memref<1x32xf32, #tpu.memory_space<vmem>>, vector<1x32xf32>
    %225 = vector.broadcast %224 : vector<1x32xf32> to vector<16x32xf32>
    %226 = arith.addf %223, %225 : vector<16x32xf32>
    %227 = arith.addf %226, %180 : vector<16x32xf32>
    %cst_87 = arith.constant dense<0.000000e+00> : vector<16xf32>
    %228 = vector.multi_reduction <add>, %227, %cst_87 [1] : vector<16x32xf32> to vector<16xf32>
    %229 = vector.shape_cast %228 : vector<16xf32> to vector<16x1xf32>
    %cst_88 = arith.constant 3.200000e+01 : f32
    %230 = vector.broadcast %cst_88 : f32 to vector<16x1xf32>
    %231 = arith.divf %229, %230 : vector<16x1xf32>
    %232 = vector.broadcast %231 : vector<16x1xf32> to vector<16x32xf32>
    %233 = arith.subf %227, %232 : vector<16x32xf32>
    %234 = arith.mulf %233, %233 : vector<16x32xf32>
    %cst_89 = arith.constant dense<0.000000e+00> : vector<16xf32>
    %235 = vector.multi_reduction <add>, %234, %cst_89 [1] : vector<16x32xf32> to vector<16xf32>
    %236 = vector.shape_cast %235 : vector<16xf32> to vector<16x1xf32>
    %cst_90 = arith.constant 3.200000e+01 : f32
    %237 = vector.broadcast %cst_90 : f32 to vector<16x1xf32>
    %238 = arith.divf %236, %237 : vector<16x1xf32>
    %239 = vector.broadcast %231 : vector<16x1xf32> to vector<16x32xf32>
    %240 = arith.subf %227, %239 : vector<16x32xf32>
    %cst_91 = arith.constant 9.99999974E-6 : f32
    %241 = vector.broadcast %cst_91 : f32 to vector<16x1xf32>
    %242 = arith.addf %238, %241 : vector<16x1xf32>
    %243 = math.rsqrt %242 : vector<16x1xf32>
    %244 = vector.broadcast %243 : vector<16x1xf32> to vector<16x32xf32>
    %245 = arith.mulf %240, %244 : vector<16x32xf32>
    %246 = arith.mulf %36, %245 : vector<16x32xf32>
    %247 = arith.addf %246, %37 : vector<16x32xf32>
    %248 = vector.broadcast %3 : vector<16x1xf32> to vector<16x32xf32>
    %249 = arith.mulf %247, %248 : vector<16x32xf32>
    %c0_92 = arith.constant 0 : index
    %c0_93 = arith.constant 0 : index
    %250 = vector.load %arg15[%c0_92, %c0_93] : memref<16x32xf32, #tpu.memory_space<vmem>>, vector<16x32xf32>
    tpu.vector_store %arg15[%c0_92, %c0_93], %249 {strides = array<i32>} : memref<16x32xf32, #tpu.memory_space<vmem>>, vector<16x32xf32>,
    return
  }
  func.func @transform_0(%arg0: i32) -> (i32, i32) {
    %c0_i32 = arith.constant 0 : i32
    %c0_i32_0 = arith.constant 0 : i32
    %c0_i32_1 = arith.constant 0 : i32
    return %c0_i32, %c0_i32_0 : i32, i32
  }
  func.func @transform_1(%arg0: i32) -> (i32, i32) {
    %c0_i32 = arith.constant 0 : i32
    %c0_i32_0 = arith.constant 0 : i32
    %c0_i32_1 = arith.constant 0 : i32
    return %c0_i32, %c0_i32_0 : i32, i32
  }
  func.func @transform_2(%arg0: i32) -> (i32, i32, i32) {
    %c0_i32 = arith.constant 0 : i32
    %c0_i32_0 = arith.constant 0 : i32
    %c0_i32_1 = arith.constant 0 : i32
    %c0_i32_2 = arith.constant 0 : i32
    return %c0_i32, %c0_i32_0, %c0_i32_1 : i32, i32, i32
  }
  func.func @transform_3(%arg0: i32) -> (i32, i32) {
    %c0_i32 = arith.constant 0 : i32
    %c0_i32_0 = arith.constant 0 : i32
    %c0_i32_1 = arith.constant 0 : i32
    return %c0_i32, %c0_i32_0 : i32, i32
  }
  func.func @transform_4(%arg0: i32) -> (i32, i32) {
    %c0_i32 = arith.constant 0 : i32
    %c0_i32_0 = arith.constant 0 : i32
    %c0_i32_1 = arith.constant 0 : i32
    return %c0_i32, %c0_i32_0 : i32, i32
  }
  func.func @transform_5(%arg0: i32) -> (i32, i32) {
    %c0_i32 = arith.constant 0 : i32
    %c0_i32_0 = arith.constant 0 : i32
    %c0_i32_1 = arith.constant 0 : i32
    return %c0_i32, %c0_i32_0 : i32, i32
  }
  func.func @transform_6(%arg0: i32) -> (i32, i32) {
    %c0_i32 = arith.constant 0 : i32
    %c0_i32_0 = arith.constant 0 : i32
    %c0_i32_1 = arith.constant 0 : i32
    return %c0_i32, %c0_i32_0 : i32, i32
  }
  func.func @transform_7(%arg0: i32) -> (i32, i32) {
    %c0_i32 = arith.constant 0 : i32
    %c0_i32_0 = arith.constant 0 : i32
    %c0_i32_1 = arith.constant 0 : i32
    return %c0_i32, %c0_i32_0 : i32, i32
  }
  func.func @transform_8(%arg0: i32) -> (i32, i32, i32) {
    %c0_i32 = arith.constant 0 : i32
    %c0_i32_0 = arith.constant 0 : i32
    %c0_i32_1 = arith.constant 0 : i32
    %c0_i32_2 = arith.constant 0 : i32
    return %c0_i32, %c0_i32_0, %c0_i32_1 : i32, i32, i32
  }
  func.func @transform_9(%arg0: i32) -> (i32, i32, i32) {
    %c0_i32 = arith.constant 0 : i32
    %c0_i32_0 = arith.constant 0 : i32
    %c0_i32_1 = arith.constant 0 : i32
    %c0_i32_2 = arith.constant 0 : i32
    return %c0_i32, %c0_i32_0, %c0_i32_1 : i32, i32, i32
  }
  func.func @transform_10(%arg0: i32) -> (i32, i32) {
    %c0_i32 = arith.constant 0 : i32
    %c0_i32_0 = arith.constant 0 : i32
    %c0_i32_1 = arith.constant 0 : i32
    return %c0_i32, %c0_i32_0 : i32, i32
  }
  func.func @transform_11(%arg0: i32) -> (i32, i32) {
    %c0_i32 = arith.constant 0 : i32
    %c0_i32_0 = arith.constant 0 : i32
    %c0_i32_1 = arith.constant 0 : i32
    return %c0_i32, %c0_i32_0 : i32, i32
  }
  func.func @transform_12(%arg0: i32) -> (i32, i32) {
    %c0_i32 = arith.constant 0 : i32
    %c0_i32_0 = arith.constant 0 : i32
    %c0_i32_1 = arith.constant 0 : i32
    return %c0_i32, %c0_i32_0 : i32, i32
  }
  func.func @transform_13(%arg0: i32) -> (i32, i32) {
    %c0_i32 = arith.constant 0 : i32
    %c0_i32_0 = arith.constant 0 : i32
    %c0_i32_1 = arith.constant 0 : i32
    return %c0_i32, %c0_i32_0 : i32, i32
  }
  func.func @transform_14(%arg0: i32) -> (i32, i32) {
    %c0_i32 = arith.constant 0 : i32
    %c0_i32_0 = arith.constant 0 : i32
    %c0_i32_1 = arith.constant 0 : i32
    return %c0_i32, %c0_i32_0 : i32, i32
  }
  func.func @transform_15(%arg0: i32) -> (i32, i32, i32) {
    %c0_i32 = arith.constant 0 : i32
    %c0_i32_0 = arith.constant 0 : i32
    %c0_i32_1 = arith.constant 0 : i32
    %c0_i32_2 = arith.constant 0 : i32
    return %c0_i32, %c0_i32_0, %c0_i32_1 : i32, i32, i32
  }
}

</mosaic_0001>

<llo_original>
// kernel: fft_block_forward.1
$region0: #{fft_block_forward.1}
  #allocation0 [shape = 'u32[]', space=smem, size = 0x4, offset = 0x4, fixed_abs, tag = 'smem constant byte address 0x4 - core index']
  #allocation1 [shape = 'u32[72,128]{1,0:T(1,128)}', space=vmem, size = 0x9000, scoped, tag = 'internal scratch']
  %s0 = inlined_call_operand.vmem [shape: f32[16,32], index: 0, kind: input, shape index: {}]
  %s1 = inlined_call_operand.vmem [shape: f32[16,1], index: 1, kind: input, shape index: {}]
  %s2 = inlined_call_operand.vmem [shape: f32[2,8,8], index: 2, kind: input, shape index: {}]
  %s3 = inlined_call_operand.vmem [shape: f32[2,24], index: 3, kind: input, shape index: {}]
  %s4 = inlined_call_operand.vmem [shape: f32[32,96], index: 4, kind: input, shape index: {}]
  %s5 = inlined_call_operand.vmem [shape: f32[1,96], index: 5, kind: input, shape index: {}]
  %s6 = inlined_call_operand.vmem [shape: f32[32,32], index: 6, kind: input, shape index: {}]
  %s7 = inlined_call_operand.vmem [shape: f32[1,32], index: 7, kind: input, shape index: {}]
  %s8 = inlined_call_operand.vmem [shape: f32[2,24,64], index: 8, kind: input, shape index: {}]
  %s9 = inlined_call_operand.vmem [shape: f32[2,1,64], index: 9, kind: input, shape index: {}]
  %s10 = inlined_call_operand.vmem [shape: f32[288,64], index: 10, kind: input, shape index: {}]
  %s11 = inlined_call_operand.vmem [shape: f32[1,64], index: 11, kind: input, shape index: {}]
  %s12 = inlined_call_operand.vmem [shape: f32[64,32], index: 12, kind: input, shape index: {}]
  %s13 = inlined_call_operand.vmem [shape: f32[1,32], index: 13, kind: input, shape index: {}]
  %s14 = inlined_call_operand.hbm [shape: f32[16,32], index: 14, kind: output, shape index: {0}]
  %s15 = inlined_call_operand.hbm [shape: f32[4,8,8], index: 15, kind: output, shape index: {1}]
  %16 = xla_tuple %s14, %s15
  %s17 = sld [smem:[#allocation0]]
  $region74: #{fft_block_forward.1} parent=0
    _
  %s19 = ssub.s32 1, %s17
  %s20 = scalar_select 0, %s19, %s17
  $region1: #{fft_block_forward.1} parent=0
    #allocation2 [shape = 'u8[8192]{0}', space=vmem, size = 0x2000, scoped, tag = 'output window, operand 0, single buffered']
    #allocation3 [shape = 's32[1]{0}', space=sflag, size = 0x4, scoped, tag = 'scoped memory for fft_block_forward.1']
    #allocation4 [shape = 'u8[16384]{0}', space=vmem, size = 0x4000, scoped, tag = 'output window, operand 1, single buffered']
    #allocation5 [shape = 's32[1]{0}', space=sflag, size = 0x4, scoped, tag = 'scoped memory for fft_block_forward.1']
    %21 = vsyncpa [#allocation3], 0
    %22 = vsyncpa [#allocation5], 0
    // Predicated region
    $region2: #{fft_block_forward.1} parent=1 // pred_check
      _
    $region3: #{fft_block_forward.1} parent=1 // pred_check_branch
      %24 = sbr.rel (0) target = $region5
    $region4: #{fft_block_forward.1} parent=1 // pred_region
      _
    $region5: #{fft_block_forward.1} parent=1 // pred_fallthru
      _
    // Predicated region
    $region6: #{fft_block_forward.1} parent=1 // pred_check
      _
    $region7: #{fft_block_forward.1} parent=1 // pred_check_branch
      %26 = sbr.rel (0) target = $region9
    $region8: #{fft_block_forward.1} parent=1 // pred_region
      _
    $region9: #{fft_block_forward.1} parent=1 // pred_fallthru
      _
    // Predicated region
    $region10: #{fft_block_forward.1} parent=1 // pred_check
      _
    $region11: #{fft_block_forward.1} parent=1 // pred_check_branch
      %28 = sbr.rel (0) target = $region13
    $region12: #{fft_block_forward.1} parent=1 // pred_region
      _
    $region13: #{fft_block_forward.1} parent=1 // pred_fallthru
      _
    // Predicated region
    $region14: #{fft_block_forward.1} parent=1 // pred_check
      _
    $region15: #{fft_block_forward.1} parent=1 // pred_check_branch
      %30 = sbr.rel (0) target = $region17
    $region16: #{fft_block_forward.1} parent=1 // pred_region
      _
    $region17: #{fft_block_forward.1} parent=1 // pred_fallthru
      _
    // Predicated region
    $region18: #{fft_block_forward.1} parent=1 // pred_check
      _
    $region19: #{fft_block_forward.1} parent=1 // pred_check_branch
      %32 = sbr.rel (0) target = $region21
    $region20: #{fft_block_forward.1} parent=1 // pred_region
      _
    $region21: #{fft_block_forward.1} parent=1 // pred_fallthru
      _
    // Predicated region
    $region22: #{fft_block_forward.1} parent=1 // pred_check
      _
    $region23: #{fft_block_forward.1} parent=1 // pred_check_branch
      %34 = sbr.rel (0) target = $region25
    $region24: #{fft_block_forward.1} parent=1 // pred_region
      _
    $region25: #{fft_block_forward.1} parent=1 // pred_fallthru
      _
    // Predicated region
    $region26: #{fft_block_forward.1} parent=1 // pred_check
      _
    $region27: #{fft_block_forward.1} parent=1 // pred_check_branch
      %36 = sbr.rel (0) target = $region29
    $region28: #{fft_block_forward.1} parent=1 // pred_region
      _
    $region29: #{fft_block_forward.1} parent=1 // pred_fallthru
      _
    // Predicated region
    $region30: #{fft_block_forward.1} parent=1 // pred_check
      _
    $region31: #{fft_block_forward.1} parent=1 // pred_check_branch
      %38 = sbr.rel (0) target = $region33
    $region32: #{fft_block_forward.1} parent=1 // pred_region
      _
    $region33: #{fft_block_forward.1} parent=1 // pred_fallthru
      _
    // Predicated region
    $region34: #{fft_block_forward.1} parent=1 // pred_check
      _
    $region35: #{fft_block_forward.1} parent=1 // pred_check_branch
      %40 = sbr.rel (0) target = $region37
    $region36: #{fft_block_forward.1} parent=1 // pred_region
      _
    $region37: #{fft_block_forward.1} parent=1 // pred_fallthru
      _
    // Predicated region
    $region38: #{fft_block_forward.1} parent=1 // pred_check
      _
    $region39: #{fft_block_forward.1} parent=1 // pred_check_branch
      %42 = sbr.rel (0) target = $region41
    $region40: #{fft_block_forward.1} parent=1 // pred_region
      _
    $region41: #{fft_block_forward.1} parent=1 // pred_fallthru
      _
    // Predicated region
    $region42: #{fft_block_forward.1} parent=1 // pred_check
      _
    $region43: #{fft_block_forward.1} parent=1 // pred_check_branch
      %44 = sbr.rel (0) target = $region45
    $region44: #{fft_block_forward.1} parent=1 // pred_region
      _
    $region45: #{fft_block_forward.1} parent=1 // pred_fallthru
      _
    // Predicated region
    $region46: #{fft_block_forward.1} parent=1 // pred_check
      _
    $region47: #{fft_block_forward.1} parent=1 // pred_check_branch
      %46 = sbr.rel (0) target = $region49
    $region48: #{fft_block_forward.1} parent=1 // pred_region
      _
    $region49: #{fft_block_forward.1} parent=1 // pred_fallthru
      _
    // Predicated region
    $region50: #{fft_block_forward.1} parent=1 // pred_check
      _
    $region51: #{fft_block_forward.1} parent=1 // pred_check_branch
      %48 = sbr.rel (0) target = $region53
    $region52: #{fft_block_forward.1} parent=1 // pred_region
      _
    $region53: #{fft_block_forward.1} parent=1 // pred_fallthru
      _
    // Predicated region
    $region54: #{fft_block_forward.1} parent=1 // pred_check
      _
    $region55: #{fft_block_forward.1} parent=1 // pred_check_branch
      %50 = sbr.rel (0) target = $region57
    $region56: #{fft_block_forward.1} parent=1 // pred_region
      _
    $region57: #{fft_block_forward.1} parent=1 // pred_fallthru
      _
    %v51 = vld [vmem:[%s0] sm:$0xff]
    %v52 = vld [vmem:[%s0 + $0x8] sm:$0xff]
    %v53 = vld [vmem:[%s1] sm:$0xff]
    %v54 = vld [vmem:[%s1 + $0x8] sm:$0xff]
    %v55 = vsub.f32 1.0, %v53
    %v56 = vsub.f32 1.0, %v54
    %v57 = vld [vmem:[%s2] sm:$0xff]
    %v58 = vld [vmem:[%s2 + $0x8] sm:$0xff]
    %v59 = vld [vmem:[%s3] sm:$0x3]
    %v60 = vld [vmem:[%s8] sm:$0xff]
    %v61 = vld [vmem:[%s8 + $0x8] sm:$0xff]
    %v62 = vld [vmem:[%s8 + $0x10] sm:$0xff]
    %v63 = vld [vmem:[%s9] sm:$0x1]
    %v65 = vperm.slane %v63, 0
    %vm67 = vcmask 195584
    %v69 = vsel %vm67, %v59, 0
    %71 = vmatpush.msra.mxu0 0.0
    %72 = vmatpush.msra.mxu0 0.0
    %73 = vmatpush.msra.mxu0 0.0
    %74 = vmatpush.msra.mxu0 0.0
    %75 = vmatpush.msra.mxu0 0.0
    %76 = vmatpush.msra.mxu0 0.0
    %77 = vmatpush.msra.mxu0 0.0
    %78 = vmatpush.msra.mxu0 0.0
    %79 = vmatpush.msra.mxu0 0.0
    %80 = vmatpush.msra.mxu0 0.0
    %81 = vmatpush.msra.mxu0 0.0
    %82 = vmatpush.msra.mxu0 0.0
    %83 = vmatpush.msra.mxu0 0.0
    %84 = vmatpush.msra.mxu0 %v62
    %85 = vmatpush.msra.mxu0 %v61
    %86 = vmatpush.msra.mxu0 %v60
    %87 = vmatmul.f32.gmra.mxu0 %v69
    %v88 = vpop.f32.mrf.mxu0
    %v89 = vadd.f32 %v65, %v88
    %90 = vdwg.mxu0
    %s91 = scalar_lea.vmem %s8, 24
    %v92 = vld [vmem:[%s91] sm:$0xff]
    %v93 = vld [vmem:[%s91 + $0x8] sm:$0xff]
    %v94 = vld [vmem:[%s91 + $0x10] sm:$0xff]
    %s95 = scalar_lea.vmem %s9, 1
    %v96 = vld [vmem:[%s95] sm:$0x1]
    %v98 = vperm.slane %v96, 0
    %100 = vmatpush.msra.mxu0 0.0
    %101 = vmatpush.msra.mxu0 0.0
    %102 = vmatpush.msra.mxu0 0.0
    %103 = vmatpush.msra.mxu0 0.0
    %104 = vmatpush.msra.mxu0 0.0
    %105 = vmatpush.msra.mxu0 0.0
    %106 = vmatpush.msra.mxu0 0.0
    %107 = vmatpush.msra.mxu0 0.0
    %108 = vmatpush.msra.mxu0 0.0
    %109 = vmatpush.msra.mxu0 0.0
    %110 = vmatpush.msra.mxu0 0.0
    %111 = vmatpush.msra.mxu0 0.0
    %112 = vmatpush.msra.mxu0 0.0
    %113 = vmatpush.msra.mxu0 %v94
    %114 = vmatpush.msra.mxu0 %v93
    %115 = vmatpush.msra.mxu0 %v92
    %116 = vmatmul.f32.gmra.mxu0 %v69
    %v117 = vpop.f32.mrf.mxu0
    %v118 = vadd.f32 %v98, %v117
    %119 = vdwg.mxu0
    %v120 = vperm.slane %v89, 0
    %v121 = vperm.slane %v89, 1
    %v122 = vperm.slane %v118, 0
    %v123 = vperm.slane %v118, 1
    %v124 = vld [vmem:[%s4] sm:$0xff]
    %v125 = vld [vmem:[%s4 + $0x8] sm:$0xff]
    %v126 = vld [vmem:[%s4 + $0x10] sm:$0xff]
    %v127 = vld [vmem:[%s4 + $0x18] sm:$0xff]
    %v128 = vld [vmem:[%s5] sm:$0x1]
    %v130 = vperm.slane %v128, 0
    %vm132 = vcmask 261120
    %v134 = vsel %vm132, %v51, 0
    %v137 = vsel %vm132, %v52, 0
    %139 = vmatpush.msra.mxu0 0.0
    %140 = vmatpush.msra.mxu0 0.0
    %141 = vmatpush.msra.mxu0 0.0
    %142 = vmatpush.msra.mxu0 0.0
    %143 = vmatpush.msra.mxu0 0.0
    %144 = vmatpush.msra.mxu0 0.0
    %145 = vmatpush.msra.mxu0 0.0
    %146 = vmatpush.msra.mxu0 0.0
    %147 = vmatpush.msra.mxu0 0.0
    %148 = vmatpush.msra.mxu0 0.0
    %149 = vmatpush.msra.mxu0 0.0
    %150 = vmatpush.msra.mxu0 0.0
    %151 = vmatpush.msra.mxu0 %v127
    %152 = vmatpush.msra.mxu0 %v126
    %153 = vmatpush.msra.mxu0 %v125
    %154 = vmatpush.msra.mxu0 %v124
    %155 = vmatmul.f32.gmra.mxu0 %v134
    %v156 = vpop.f32.mrf.mxu0
    %v157 = vadd.f32 %v130, %v156
    %158 = vmatmul.f32.gmra.mxu0 %v137
    %v159 = vpop.f32.mrf.mxu0
    %v160 = vadd.f32 %v130, %v159
    %161 = vdwg.mxu0
    %163 = vrot.lane.b32.xlu0 %v157, 96
    %v164 = vpop.permute.xlu0 %163
    %vm165 = vcmask 130048
    %v166 = vsel %vm165, %v157, 0
    %v168 = vsel %vm165, %v164, 0
    %170 = vmatpush.xpose.msra.mxu0 0.0
    %171 = vmatpush.xpose.msra.mxu0 0.0
    %172 = vmatpush.xpose.msra.mxu0 0.0
    %173 = vmatpush.xpose.msra.mxu0 0.0
    %174 = vmatpush.xpose.msra.mxu0 0.0
    %175 = vmatpush.xpose.msra.mxu0 0.0
    %176 = vmatpush.xpose.msra.mxu0 0.0
    %177 = vmatpush.xpose.msra.mxu0 0.0
    %178 = vmatpush.xpose.msra.mxu0 0.0
    %179 = vmatpush.xpose.msra.mxu0 0.0
    %180 = vmatpush.xpose.msra.mxu0 0.0
    %181 = vmatpush.xpose.msra.mxu0 0.0
    %182 = vmatpush.xpose.msra.mxu0 0.0
    %183 = vmatpush.xpose.msra.mxu0 0.0
    %184 = vmatpush.xpose.msra.mxu0 0.0
    %185 = vmatpush.xpose.msra.mxu0 %v168
    %186 = vmatmul.f32.gmra.mxu0 %v166
    %v187 = vpop.f32.mrf.mxu0
    %v188 = vadd.f32 0.0, %v187
    %189 = vdwg.mxu0
    %v190 = vmul.f32 %v188, 0.25
    %vm191 = vcmp.gt.f32.partialorder %v57, 0.5
    %v192 = vsel %vm191, -1e+30, %v190
    %vm193 = vcmask 64512
    %v194 = vsel %vm193, %v192, -inf
    %195 = vmax.xlane.f32.xlu0 %v194
    %v196 = vpop.xlane.xlu0 %195
    %v197 = vsub.f32 %v192, %v196
    %v198 = vmul.f32 %v197, 1.442695
    %v199 = vpow.pop %v198
    %v200 = vsel %vm193, %v199, 0.0
    %201 = vadd.xlane.f32.xlu0 %v200
    %v202 = vpop.xlane.xlu0 %201
    %v203 = vrcp.pop %v202
    %v204 = vmul.f32 %v199, %v203
    %205 = vst.msk [vmem:[#allocation4] sm:$0xff] %vm193, %v204
    %206 = vrot.lane.b32.xlu0 %v157, 64
    %v207 = vpop.permute.xlu0 %206
    %v210 = vsel %vm193, %v204, 0
    %212 = vmatpush.msra.mxu0 0.0
    %213 = vmatpush.msra.mxu0 0.0
    %214 = vmatpush.msra.mxu0 0.0
    %215 = vmatpush.msra.mxu0 0.0
    %216 = vmatpush.msra.mxu0 0.0
    %217 = vmatpush.msra.mxu0 0.0
    %218 = vmatpush.msra.mxu0 0.0
    %219 = vmatpush.msra.mxu0 0.0
    %220 = vmatpush.msra.mxu0 0.0
    %221 = vmatpush.msra.mxu0 0.0
    %222 = vmatpush.msra.mxu0 0.0
    %223 = vmatpush.msra.mxu0 0.0
    %224 = vmatpush.msra.mxu0 0.0
    %225 = vmatpush.msra.mxu0 0.0
    %226 = vmatpush.msra.mxu0 0.0
    %227 = vmatpush.msra.mxu0 %v207
    %228 = vmatmul.f32.gmra.mxu0 %v210
    %v229 = vpop.f32.mrf.mxu0
    %v230 = vadd.f32 0.0, %v229
    %231 = vdwg.mxu0
    %232 = vrot.lane.b32.xlu0 %v157, 112
    %v233 = vpop.permute.xlu0 %232
    %234 = vrot.lane.b32.xlu0 %v157, 80
    %v235 = vpop.permute.xlu0 %234
    %v236 = vsel %vm165, %v233, 0
    %v238 = vsel %vm165, %v235, 0
    %240 = vmatpush.xpose.msra.mxu0 0.0
    %241 = vmatpush.xpose.msra.mxu0 0.0
    %242 = vmatpush.xpose.msra.mxu0 0.0
    %243 = vmatpush.xpose.msra.mxu0 0.0
    %244 = vmatpush.xpose.msra.mxu0 0.0
    %245 = vmatpush.xpose.msra.mxu0 0.0
    %246 = vmatpush.xpose.msra.mxu0 0.0
    %247 = vmatpush.xpose.msra.mxu0 0.0
    %248 = vmatpush.xpose.msra.mxu0 0.0
    %249 = vmatpush.xpose.msra.mxu0 0.0
    %250 = vmatpush.xpose.msra.mxu0 0.0
    %251 = vmatpush.xpose.msra.mxu0 0.0
    %252 = vmatpush.xpose.msra.mxu0 0.0
    %253 = vmatpush.xpose.msra.mxu0 0.0
    %254 = vmatpush.xpose.msra.mxu0 0.0
    %255 = vmatpush.xpose.msra.mxu0 %v238
    %256 = vmatmul.f32.gmra.mxu0 %v236
    %v257 = vpop.f32.mrf.mxu0
    %v258 = vadd.f32 0.0, %v257
    %259 = vdwg.mxu0
    %v260 = vmul.f32 %v258, 0.25
    %v261 = vsel %vm191, -1e+30, %v260
    %v262 = vsel %vm193, %v261, -inf
    %263 = vmax.xlane.f32.xlu0 %v262
    %v264 = vpop.xlane.xlu0 %263
    %v265 = vsub.f32 %v261, %v264
    %v266 = vmul.f32 %v265, 1.442695
    %v267 = vpow.pop %v266
    %v268 = vsel %vm193, %v267, 0.0
    %269 = vadd.xlane.f32.xlu0 %v268
    %v270 = vpop.xlane.xlu0 %269
    %v271 = vrcp.pop %v270
    %v272 = vmul.f32 %v267, %v271
    %s273 = scalar_lea.vmem [#allocation4], 16
    %274 = vst.msk [vmem:[%s273] sm:$0xff] %vm193, %v272
    %275 = vrot.lane.b32.xlu0 %v157, 48
    %v276 = vpop.permute.xlu0 %275
    %v279 = vsel %vm193, %v272, 0
    %281 = vmatpush.msra.mxu0 0.0
    %282 = vmatpush.msra.mxu0 0.0
    %283 = vmatpush.msra.mxu0 0.0
    %284 = vmatpush.msra.mxu0 0.0
    %285 = vmatpush.msra.mxu0 0.0
    %286 = vmatpush.msra.mxu0 0.0
    %287 = vmatpush.msra.mxu0 0.0
    %288 = vmatpush.msra.mxu0 0.0
    %289 = vmatpush.msra.mxu0 0.0
    %290 = vmatpush.msra.mxu0 0.0
    %291 = vmatpush.msra.mxu0 0.0
    %292 = vmatpush.msra.mxu0 0.0
    %293 = vmatpush.msra.mxu0 0.0
    %294 = vmatpush.msra.mxu0 0.0
    %295 = vmatpush.msra.mxu0 0.0
    %296 = vmatpush.msra.mxu0 %v276
    %297 = vmatmul.f32.gmra.mxu0 %v279
    %v298 = vpop.f32.mrf.mxu0
    %v299 = vadd.f32 0.0, %v298
    %300 = vdwg.mxu0
    %302 = vrot.lane.b32.xlu0 %v299, 16
    %v303 = vpop.permute.xlu0 %302
    %v305 = vsel %vm165, %v230, %v303
    %307 = vrot.lane.b32.xlu0 %v160, 96
    %v308 = vpop.permute.xlu0 %307
    %v309 = vsel %vm165, %v160, 0
    %v311 = vsel %vm165, %v308, 0
    %313 = vmatpush.xpose.msra.mxu0 0.0
    %314 = vmatpush.xpose.msra.mxu0 0.0
    %315 = vmatpush.xpose.msra.mxu0 0.0
    %316 = vmatpush.xpose.msra.mxu0 0.0
    %317 = vmatpush.xpose.msra.mxu0 0.0
    %318 = vmatpush.xpose.msra.mxu0 0.0
    %319 = vmatpush.xpose.msra.mxu0 0.0
    %320 = vmatpush.xpose.msra.mxu0 0.0
    %321 = vmatpush.xpose.msra.mxu0 0.0
    %322 = vmatpush.xpose.msra.mxu0 0.0
    %323 = vmatpush.xpose.msra.mxu0 0.0
    %324 = vmatpush.xpose.msra.mxu0 0.0
    %325 = vmatpush.xpose.msra.mxu0 0.0
    %326 = vmatpush.xpose.msra.mxu0 0.0
    %327 = vmatpush.xpose.msra.mxu0 0.0
    %328 = vmatpush.xpose.msra.mxu0 %v311
    %329 = vmatmul.f32.gmra.mxu0 %v309
    %v330 = vpop.f32.mrf.mxu0
    %v331 = vadd.f32 0.0, %v330
    %332 = vdwg.mxu0
    %v333 = vmul.f32 %v331, 0.25
    %vm334 = vcmp.gt.f32.partialorder %v58, 0.5
    %v335 = vsel %vm334, -1e+30, %v333
    %v336 = vsel %vm193, %v335, -inf
    %337 = vmax.xlane.f32.xlu0 %v336
    %v338 = vpop.xlane.xlu0 %337
    %v339 = vsub.f32 %v335, %v338
    %v340 = vmul.f32 %v339, 1.442695
    %v341 = vpow.pop %v340
    %v342 = vsel %vm193, %v341, 0.0
    %343 = vadd.xlane.f32.xlu0 %v342
    %v344 = vpop.xlane.xlu0 %343
    %v345 = vrcp.pop %v344
    %v346 = vmul.f32 %v341, %v345
    %s347 = scalar_lea.vmem [#allocation4], 8
    %348 = vst.msk [vmem:[%s347] sm:$0xff] %vm193, %v346
    %349 = vrot.lane.b32.xlu0 %v160, 64
    %v350 = vpop.permute.xlu0 %349
    %v353 = vsel %vm193, %v346, 0
    %355 = vmatpush.msra.mxu0 0.0
    %356 = vmatpush.msra.mxu0 0.0
    %357 = vmatpush.msra.mxu0 0.0
    %358 = vmatpush.msra.mxu0 0.0
    %359 = vmatpush.msra.mxu0 0.0
    %360 = vmatpush.msra.mxu0 0.0
    %361 = vmatpush.msra.mxu0 0.0
    %362 = vmatpush.msra.mxu0 0.0
    %363 = vmatpush.msra.mxu0 0.0
    %364 = vmatpush.msra.mxu0 0.0
    %365 = vmatpush.msra.mxu0 0.0
    %366 = vmatpush.msra.mxu0 0.0
    %367 = vmatpush.msra.mxu0 0.0
    %368 = vmatpush.msra.mxu0 0.0
    %369 = vmatpush.msra.mxu0 0.0
    %370 = vmatpush.msra.mxu0 %v350
    %371 = vmatmul.f32.gmra.mxu0 %v353
    %v372 = vpop.f32.mrf.mxu0
    %v373 = vadd.f32 0.0, %v372
    %374 = vdwg.mxu0
    %375 = vrot.lane.b32.xlu0 %v160, 112
    %v376 = vpop.permute.xlu0 %375
    %377 = vrot.lane.b32.xlu0 %v160, 80
    %v378 = vpop.permute.xlu0 %377
    %v379 = vsel %vm165, %v376, 0
    %v381 = vsel %vm165, %v378, 0
    %383 = vmatpush.xpose.msra.mxu0 0.0
    %384 = vmatpush.xpose.msra.mxu0 0.0
    %385 = vmatpush.xpose.msra.mxu0 0.0
    %386 = vmatpush.xpose.msra.mxu0 0.0
    %387 = vmatpush.xpose.msra.mxu0 0.0
    %388 = vmatpush.xpose.msra.mxu0 0.0
    %389 = vmatpush.xpose.msra.mxu0 0.0
    %390 = vmatpush.xpose.msra.mxu0 0.0
    %391 = vmatpush.xpose.msra.mxu0 0.0
    %392 = vmatpush.xpose.msra.mxu0 0.0
    %393 = vmatpush.xpose.msra.mxu0 0.0
    %394 = vmatpush.xpose.msra.mxu0 0.0
    %395 = vmatpush.xpose.msra.mxu0 0.0
    %396 = vmatpush.xpose.msra.mxu0 0.0
    %397 = vmatpush.xpose.msra.mxu0 0.0
    %398 = vmatpush.xpose.msra.mxu0 %v381
    %399 = vmatmul.f32.gmra.mxu0 %v379
    %v400 = vpop.f32.mrf.mxu0
    %v401 = vadd.f32 0.0, %v400
    %402 = vdwg.mxu0
    %v403 = vmul.f32 %v401, 0.25
    %v404 = vsel %vm334, -1e+30, %v403
    %v405 = vsel %vm193, %v404, -inf
    %406 = vmax.xlane.f32.xlu0 %v405
    %v407 = vpop.xlane.xlu0 %406
    %v408 = vsub.f32 %v404, %v407
    %v409 = vmul.f32 %v408, 1.442695
    %v410 = vpow.pop %v409
    %v411 = vsel %vm193, %v410, 0.0
    %412 = vadd.xlane.f32.xlu0 %v411
    %v413 = vpop.xlane.xlu0 %412
    %v414 = vrcp.pop %v413
    %v415 = vmul.f32 %v410, %v414
    %s416 = scalar_lea.vmem [#allocation4], 24
    %417 = vst.msk [vmem:[%s416] sm:$0xff] %vm193, %v415
    %418 = vrot.lane.b32.xlu0 %v160, 48
    %v419 = vpop.permute.xlu0 %418
    %v422 = vsel %vm193, %v415, 0
    %424 = vmatpush.msra.mxu0 0.0
    %425 = vmatpush.msra.mxu0 0.0
    %426 = vmatpush.msra.mxu0 0.0
    %427 = vmatpush.msra.mxu0 0.0
    %428 = vmatpush.msra.mxu0 0.0
    %429 = vmatpush.msra.mxu0 0.0
    %430 = vmatpush.msra.mxu0 0.0
    %431 = vmatpush.msra.mxu0 0.0
    %432 = vmatpush.msra.mxu0 0.0
    %433 = vmatpush.msra.mxu0 0.0
    %434 = vmatpush.msra.mxu0 0.0
    %435 = vmatpush.msra.mxu0 0.0
    %436 = vmatpush.msra.mxu0 0.0
    %437 = vmatpush.msra.mxu0 0.0
    %438 = vmatpush.msra.mxu0 0.0
    %439 = vmatpush.msra.mxu0 %v419
    %440 = vmatmul.f32.gmra.mxu0 %v422
    %v441 = vpop.f32.mrf.mxu0
    %v442 = vadd.f32 0.0, %v441
    %443 = vdwg.mxu0
    %445 = vrot.lane.b32.xlu0 %v442, 16
    %v446 = vpop.permute.xlu0 %445
    %v448 = vsel %vm165, %v373, %v446
    %v449 = vld [vmem:[%s6] sm:$0xff]
    %v450 = vld [vmem:[%s6 + $0x8] sm:$0xff]
    %v451 = vld [vmem:[%s6 + $0x10] sm:$0xff]
    %v452 = vld [vmem:[%s6 + $0x18] sm:$0xff]
    %v453 = vld [vmem:[%s7] sm:$0x1]
    %v455 = vperm.slane %v453, 0
    %v458 = vsel %vm132, %v305, 0
    %v461 = vsel %vm132, %v448, 0
    %463 = vmatpush.msra.mxu0 0.0
    %464 = vmatpush.msra.mxu0 0.0
    %465 = vmatpush.msra.mxu0 0.0
    %466 = vmatpush.msra.mxu0 0.0
    %467 = vmatpush.msra.mxu0 0.0
    %468 = vmatpush.msra.mxu0 0.0
    %469 = vmatpush.msra.mxu0 0.0
    %470 = vmatpush.msra.mxu0 0.0
    %471 = vmatpush.msra.mxu0 0.0
    %472 = vmatpush.msra.mxu0 0.0
    %473 = vmatpush.msra.mxu0 0.0
    %474 = vmatpush.msra.mxu0 0.0
    %475 = vmatpush.msra.mxu0 %v452
    %476 = vmatpush.msra.mxu0 %v451
    %477 = vmatpush.msra.mxu0 %v450
    %478 = vmatpush.msra.mxu0 %v449
    %479 = vmatmul.f32.gmra.mxu0 %v458
    %v480 = vpop.f32.mrf.mxu0
    %v481 = vadd.f32 %v455, %v480
    %482 = vmatmul.f32.gmra.mxu0 %v461
    %v483 = vpop.f32.mrf.mxu0
    %v484 = vadd.f32 %v455, %v483
    %485 = vdwg.mxu0
    %v486 = vadd.f32 %v481, %v51
    %v487 = vadd.f32 %v484, %v52
    %v488 = vsel %vm132, %v486, 0.0
    %489 = vadd.xlane.f32.xlu0 %v488
    %v490 = vpop.xlane.xlu0 %489
    %v491 = vsel %vm132, %v487, 0.0
    %492 = vadd.xlane.f32.xlu0 %v491
    %v493 = vpop.xlane.xlu0 %492
    %v494 = vrcp.pop 32.0
    %v495 = vmul.f32 32.0, %v494
    %v496 = vsub.f32 1.0, %v495
    %v497 = vmul.f32 %v494, %v496
    %v498 = vadd.f32 %v494, %v497
    %vm499 = vweird.f32 %v494
    %v500 = vsel %vm499, %v494, %v498
    %v501 = vmul.f32 %v490, %v500
    %v502 = vmul.f32 %v493, %v500
    %v503 = vsub.f32 %v486, %v501
    %v504 = vsub.f32 %v487, %v502
    %v505 = vmul.f32 %v503, %v503
    %v506 = vmul.f32 %v504, %v504
    %v507 = vsel %vm132, %v505, 0.0
    %508 = vadd.xlane.f32.xlu0 %v507
    %v509 = vpop.xlane.xlu0 %508
    %v510 = vsel %vm132, %v506, 0.0
    %511 = vadd.xlane.f32.xlu0 %v510
    %v512 = vpop.xlane.xlu0 %511
    %v513 = vmul.f32 %v509, %v500
    %v514 = vmul.f32 %v512, %v500
    %v515 = vadd.f32 %v513, 1e-05
    %v516 = vadd.f32 %v514, 1e-05
    %v517 = vrsqrt.pop %v515
    %v518 = vmul.f32 %v517, %v515
    %v519 = vmul.f32 %v518, %v517
    %v520 = vmul.f32 0.5, %v519
    %v521 = vsub.f32 1.5, %v520
    %v522 = vmul.f32 %v517, %v521
    %vm523 = vweird.f32 %v515
    %vm524 = vweird.f32 %v517
    %vm525 = vmor %vm523, %vm524
    %v526 = vsel %vm525, %v517, %v522
    %v527 = vrsqrt.pop %v516
    %v528 = vmul.f32 %v527, %v516
    %v529 = vmul.f32 %v528, %v527
    %v530 = vmul.f32 0.5, %v529
    %v531 = vsub.f32 1.5, %v530
    %v532 = vmul.f32 %v527, %v531
    %vm533 = vweird.f32 %v516
    %vm534 = vweird.f32 %v527
    %vm535 = vmor %vm533, %vm534
    %v536 = vsel %vm535, %v527, %v532
    %v537 = vmul.f32 %v503, %v526
    %v538 = vmul.f32 %v504, %v536
    %v539 = vmul.f32 %v120, %v537
    %v540 = vmul.f32 %v121, %v538
    %543 = vrot.lane.b32.xlu0 %v120, 96
    %v544 = vpop.permute.xlu0 %543
    %545 = vrot.lane.b32.xlu0 %v121, 96
    %v546 = vpop.permute.xlu0 %545
    %v549 = vadd.f32 %v539, %v544
    %v550 = vadd.f32 %v540, %v546
    %552 = vset.pattern.permute.xlu0 0
    %553 = vperm.xlu0 %552, %v55
    %v554 = vpop.permute.xlu0 %553
    %557 = vset.pattern.permute.xlu0 0
    %558 = vperm.xlu0 %557, %v56
    %v559 = vpop.permute.xlu0 %558
    %v561 = vmul.f32 %v549, %v554
    %v562 = vmul.f32 %v550, %v559
    %v564 = vrot.slane %v561, 4
    %vm566 = vcmask 1043456
    %v567 = vsel %vm566, 0.0, %v564
    %v568 = vsel %vm566, %v564, 0.0
    %vm571 = vcmask 1046528
    %v572 = vrot.slane %v567, 1
    %v573 = vrot.slane %v568, 1
    %v574 = vsel %vm571, %v572, %v573
    %575 = vrot.lane.b32.xlu0 %v574, 32
    %v576 = vpop.permute.xlu0 %575
    %vm578 = vcmask 1045504
    %v579 = vrot.slane %v567, 2
    %v580 = vrot.slane %v568, 2
    %v581 = vsel %vm578, %v579, %v580
    %582 = vrot.lane.b32.xlu0 %v581, 64
    %v583 = vpop.permute.xlu0 %582
    %vm585 = vcmask 1044480
    %v586 = vrot.slane %v567, 3
    %v587 = vrot.slane %v568, 3
    %v588 = vsel %vm585, %v586, %v587
    %589 = vrot.lane.b32.xlu0 %v588, 96
    %v590 = vpop.permute.xlu0 %589
    %v592 = vrot.slane %v567, 4
    %v593 = vrot.slane %v568, 4
    %v594 = vsel %vm566, %v592, %v593
    %vm596 = vcmask 1042432
    %v597 = vrot.slane %v567, 5
    %v598 = vrot.slane %v568, 5
    %v599 = vsel %vm596, %v597, %v598
    %600 = vrot.lane.b32.xlu0 %v599, 32
    %v601 = vpop.permute.xlu0 %600
    %vm603 = vcmask 1041408
    %v604 = vrot.slane %v567, 6
    %v605 = vrot.slane %v568, 6
    %v606 = vsel %vm603, %v604, %v605
    %607 = vrot.lane.b32.xlu0 %v606, 64
    %v608 = vpop.permute.xlu0 %607
    %vm610 = vcmask 1040384
    %v611 = vrot.slane %v567, 7
    %v612 = vrot.slane %v568, 7
    %v613 = vsel %vm610, %v611, %v612
    %614 = vrot.lane.b32.xlu0 %v613, 96
    %v615 = vpop.permute.xlu0 %614
    %v617 = vsel %vm132, %v567, %v576
    %vm618 = vcmask 523264
    %v619 = vsel %vm618, %v617, %v583
    %vm620 = vcmask 785408
    %v621 = vsel %vm620, %v619, %v590
    %v622 = vsel %vm132, %v594, %v601
    %v623 = vsel %vm618, %v622, %v608
    %v624 = vsel %vm620, %v623, %v615
    %v626 = vrot.slane %v562, 4
    %v628 = vsel %vm566, 0.0, %v626
    %v629 = vsel %vm566, %v626, 0.0
    %v632 = vrot.slane %v628, 1
    %v633 = vrot.slane %v629, 1
    %v634 = vsel %vm571, %v632, %v633
    %635 = vrot.lane.b32.xlu0 %v634, 32
    %v636 = vpop.permute.xlu0 %635
    %v638 = vrot.slane %v628, 2
    %v639 = vrot.slane %v629, 2
    %v640 = vsel %vm578, %v638, %v639
    %641 = vrot.lane.b32.xlu0 %v640, 64
    %v642 = vpop.permute.xlu0 %641
    %v644 = vrot.slane %v628, 3
    %v645 = vrot.slane %v629, 3
    %v646 = vsel %vm585, %v644, %v645
    %647 = vrot.lane.b32.xlu0 %v646, 96
    %v648 = vpop.permute.xlu0 %647
    %v650 = vrot.slane %v628, 4
    %v651 = vrot.slane %v629, 4
    %v652 = vsel %vm566, %v650, %v651
    %v654 = vrot.slane %v628, 5
    %v655 = vrot.slane %v629, 5
    %v656 = vsel %vm596, %v654, %v655
    %657 = vrot.lane.b32.xlu0 %v656, 32
    %v658 = vpop.permute.xlu0 %657
    %v660 = vrot.slane %v628, 6
    %v661 = vrot.slane %v629, 6
    %v662 = vsel %vm603, %v660, %v661
    %663 = vrot.lane.b32.xlu0 %v662, 64
    %v664 = vpop.permute.xlu0 %663
    %v666 = vrot.slane %v628, 7
    %v667 = vrot.slane %v629, 7
    %v668 = vsel %vm610, %v666, %v667
    %669 = vrot.lane.b32.xlu0 %v668, 96
    %v670 = vpop.permute.xlu0 %669
    %v672 = vsel %vm132, %v628, %v636
    %v673 = vsel %vm618, %v672, %v642
    %v674 = vsel %vm620, %v673, %v648
    %v675 = vsel %vm132, %v652, %v658
    %v676 = vsel %vm618, %v675, %v664
    %v677 = vsel %vm620, %v676, %v670
    %v678 = vld [vmem:[%s10] sm:$0xff]
    %v679 = vld [vmem:[%s10 + $0x8] sm:$0xff]
    %v680 = vld [vmem:[%s10 + $0x10] sm:$0xff]
    %v681 = vld [vmem:[%s10 + $0x18] sm:$0xff]
    %v682 = vld [vmem:[%s10 + $0x20] sm:$0xff]
    %v683 = vld [vmem:[%s10 + $0x28] sm:$0xff]
    %v684 = vld [vmem:[%s10 + $0x30] sm:$0xff]
    %v685 = vld [vmem:[%s10 + $0x38] sm:$0xff]
    %v686 = vld [vmem:[%s10 + $0x40] sm:$0xff]
    %v687 = vld [vmem:[%s10 + $0x48] sm:$0xff]
    %v688 = vld [vmem:[%s10 + $0x50] sm:$0xff]
    %v689 = vld [vmem:[%s10 + $0x58] sm:$0xff]
    %v690 = vld [vmem:[%s10 + $0x60] sm:$0xff]
    %v691 = vld [vmem:[%s10 + $0x68] sm:$0xff]
    %v692 = vld [vmem:[%s10 + $0x70] sm:$0xff]
    %v693 = vld [vmem:[%s10 + $0x78] sm:$0xff]
    %v694 = vld [vmem:[%s10 + $0x80] sm:$0xff]
    %v695 = vld [vmem:[%s10 + $0x88] sm:$0xff]
    %v696 = vld [vmem:[%s10 + $0x90] sm:$0xff]
    %v697 = vld [vmem:[%s10 + $0x98] sm:$0xff]
    %v698 = vld [vmem:[%s10 + $0xa0] sm:$0xff]
    %v699 = vld [vmem:[%s10 + $0xa8] sm:$0xff]
    %v700 = vld [vmem:[%s10 + $0xb0] sm:$0xff]
    %v701 = vld [vmem:[%s10 + $0xb8] sm:$0xff]
    %v702 = vld [vmem:[%s10 + $0xc0] sm:$0xff]
    %v703 = vld [vmem:[%s10 + $0xc8] sm:$0xff]
    %v704 = vld [vmem:[%s10 + $0xd0] sm:$0xff]
    %v705 = vld [vmem:[%s10 + $0xd8] sm:$0xff]
    %v706 = vld [vmem:[%s10 + $0xe0] sm:$0xff]
    %v707 = vld [vmem:[%s10 + $0xe8] sm:$0xff]
    %v708 = vld [vmem:[%s10 + $0xf0] sm:$0xff]
    %v709 = vld [vmem:[%s10 + $0xf8] sm:$0xff]
    %v710 = vld [vmem:[%s10 + $0x100] sm:$0xff]
    %v711 = vld [vmem:[%s10 + $0x108] sm:$0xff]
    %v712 = vld [vmem:[%s10 + $0x110] sm:$0xff]
    %v713 = vld [vmem:[%s10 + $0x118] sm:$0xff]
    %v714 = vld [vmem:[%s11] sm:$0x1]
    %v716 = vperm.slane %v714, 0
    %v718 = vsel %vm132, %v568, 0
    %v720 = vsel %vm132, %v629, 0
    %722 = vmatpush.msra.mxu0 %v693
    %723 = vmatpush.msra.mxu0 %v692
    %724 = vmatpush.msra.mxu0 %v691
    %725 = vmatpush.msra.mxu0 %v690
    %726 = vmatpush.msra.mxu0 %v689
    %727 = vmatpush.msra.mxu0 %v688
    %728 = vmatpush.msra.mxu0 %v687
    %729 = vmatpush.msra.mxu0 %v686
    %730 = vmatpush.msra.mxu0 %v685
    %731 = vmatpush.msra.mxu0 %v684
    %732 = vmatpush.msra.mxu0 %v683
    %733 = vmatpush.msra.mxu0 %v682
    %734 = vmatpush.msra.mxu0 %v681
    %735 = vmatpush.msra.mxu0 %v680
    %736 = vmatpush.msra.mxu0 %v679
    %737 = vmatpush.msra.mxu0 %v678
    %738 = vmatmul.f32.gmra.mxu0 %v621
    %v739 = vpop.f32.mrf.mxu0
    %v740 = vadd.f32 %v716, %v739
    %741 = vmatmul.f32.gmra.mxu0 %v674
    %v742 = vpop.f32.mrf.mxu0
    %v743 = vadd.f32 %v716, %v742
    %744 = vdwg.mxu0
    %745 = vmatpush.msra.mxu0 %v709
    %746 = vmatpush.msra.mxu0 %v708
    %747 = vmatpush.msra.mxu0 %v707
    %748 = vmatpush.msra.mxu0 %v706
    %749 = vmatpush.msra.mxu0 %v705
    %750 = vmatpush.msra.mxu0 %v704
    %751 = vmatpush.msra.mxu0 %v703
    %752 = vmatpush.msra.mxu0 %v702
    %753 = vmatpush.msra.mxu0 %v701
    %754 = vmatpush.msra.mxu0 %v700
    %755 = vmatpush.msra.mxu0 %v699
    %756 = vmatpush.msra.mxu0 %v698
    %757 = vmatpush.msra.mxu0 %v697
    %758 = vmatpush.msra.mxu0 %v696
    %759 = vmatpush.msra.mxu0 %v695
    %760 = vmatpush.msra.mxu0 %v694
    %761 = vmatmul.f32.gmra.mxu0 %v624
    %v762 = vpop.f32.mrf.mxu0
    %v763 = vadd.f32 %v740, %v762
    %764 = vmatmul.f32.gmra.mxu0 %v677
    %v765 = vpop.f32.mrf.mxu0
    %v766 = vadd.f32 %v743, %v765
    %767 = vdwg.mxu0
    %768 = vmatpush.msra.mxu0 0.0
    %769 = vmatpush.msra.mxu0 0.0
    %770 = vmatpush.msra.mxu0 0.0
    %771 = vmatpush.msra.mxu0 0.0
    %772 = vmatpush.msra.mxu0 0.0
    %773 = vmatpush.msra.mxu0 0.0
    %774 = vmatpush.msra.mxu0 0.0
    %775 = vmatpush.msra.mxu0 0.0
    %776 = vmatpush.msra.mxu0 0.0
    %777 = vmatpush.msra.mxu0 0.0
    %778 = vmatpush.msra.mxu0 0.0
    %779 = vmatpush.msra.mxu0 0.0
    %780 = vmatpush.msra.mxu0 %v713
    %781 = vmatpush.msra.mxu0 %v712
    %782 = vmatpush.msra.mxu0 %v711
    %783 = vmatpush.msra.mxu0 %v710
    %784 = vmatmul.f32.gmra.mxu0 %v718
    %v785 = vpop.f32.mrf.mxu0
    %v786 = vadd.f32 %v763, %v785
    %787 = vmatmul.f32.gmra.mxu0 %v720
    %v788 = vpop.f32.mrf.mxu0
    %v789 = vadd.f32 %v766, %v788
    %790 = vdwg.mxu0
    %v791 = vmax.f32 %v786, 0.0
    %v792 = vmax.f32 %v789, 0.0
    %v793 = vand.u32 2147483647, %v786
    %v794 = vand.u32 2147483647, %v789
    %v795 = vsub.f32 0.0, %v793
    %v796 = vsub.f32 0.0, %v794
    %v797 = vmul.f32 %v795, 1.442695
    %v798 = vpow.pop %v797
    %v799 = vmul.f32 %v796, 1.442695
    %v800 = vpow.pop %v799
    %v801 = vadd.f32 %v798, 1.0
    %v802 = vlog2.pop %v801
    %v803 = vmul.f32 %v802, 0.6931472
    %v804 = vmul.f32 -0.5, %v798
    %v805 = vadd.f32 %v804, 1.0
    %v806 = vmul.f32 %v805, %v798
    %v807 = vand.u32 2147483647, %v798
    %vm808 = vcmp.lt.f32.partialorder %v807, 0.0004427343
    %v809 = vsel %vm808, %v806, %v803
    %v810 = vadd.f32 %v800, 1.0
    %v811 = vlog2.pop %v810
    %v812 = vmul.f32 %v811, 0.6931472
    %v813 = vmul.f32 -0.5, %v800
    %v814 = vadd.f32 %v813, 1.0
    %v815 = vmul.f32 %v814, %v800
    %v816 = vand.u32 2147483647, %v800
    %vm817 = vcmp.lt.f32.partialorder %v816, 0.0004427343
    %v818 = vsel %vm817, %v815, %v812
    %v819 = vadd.f32 %v791, %v809
    %v820 = vadd.f32 %v792, %v818
    %v821 = vtanh.pop %v819
    %v822 = vtanh.pop %v820
    %v823 = vmul.f32 %v786, %v821
    %v824 = vmul.f32 %v789, %v822
    %v825 = vld [vmem:[%s12] sm:$0xff]
    %v826 = vld [vmem:[%s12 + $0x8] sm:$0xff]
    %v827 = vld [vmem:[%s12 + $0x10] sm:$0xff]
    %v828 = vld [vmem:[%s12 + $0x18] sm:$0xff]
    %v829 = vld [vmem:[%s12 + $0x20] sm:$0xff]
    %v830 = vld [vmem:[%s12 + $0x28] sm:$0xff]
    %v831 = vld [vmem:[%s12 + $0x30] sm:$0xff]
    %v832 = vld [vmem:[%s12 + $0x38] sm:$0xff]
    %v833 = vld [vmem:[%s13] sm:$0x1]
    %v835 = vperm.slane %v833, 0
    %v838 = vsel %vm618, %v823, 0
    %v841 = vsel %vm618, %v824, 0
    %843 = vmatpush.msra.mxu0 0.0
    %844 = vmatpush.msra.mxu0 0.0
    %845 = vmatpush.msra.mxu0 0.0
    %846 = vmatpush.msra.mxu0 0.0
    %847 = vmatpush.msra.mxu0 0.0
    %848 = vmatpush.msra.mxu0 0.0
    %849 = vmatpush.msra.mxu0 0.0
    %850 = vmatpush.msra.mxu0 0.0
    %851 = vmatpush.msra.mxu0 %v832
    %852 = vmatpush.msra.mxu0 %v831
    %853 = vmatpush.msra.mxu0 %v830
    %854 = vmatpush.msra.mxu0 %v829
    %855 = vmatpush.msra.mxu0 %v828
    %856 = vmatpush.msra.mxu0 %v827
    %857 = vmatpush.msra.mxu0 %v826
    %858 = vmatpush.msra.mxu0 %v825
    %859 = vmatmul.f32.gmra.mxu0 %v838
    %v860 = vpop.f32.mrf.mxu0
    %v861 = vadd.f32 %v835, %v860
    %862 = vmatmul.f32.gmra.mxu0 %v841
    %v863 = vpop.f32.mrf.mxu0
    %v864 = vadd.f32 %v835, %v863
    %865 = vdwg.mxu0
    %v866 = vadd.f32 %v861, %v561
    %v867 = vadd.f32 %v864, %v562
    %v868 = vsel %vm132, %v866, 0.0
    %869 = vadd.xlane.f32.xlu0 %v868
    %v870 = vpop.xlane.xlu0 %869
    %v871 = vsel %vm132, %v867, 0.0
    %872 = vadd.xlane.f32.xlu0 %v871
    %v873 = vpop.xlane.xlu0 %872
    %v874 = vmul.f32 %v870, %v500
    %v875 = vmul.f32 %v873, %v500
    %v876 = vsub.f32 %v866, %v874
    %v877 = vsub.f32 %v867, %v875
    %v878 = vmul.f32 %v876, %v876
    %v879 = vmul.f32 %v877, %v877
    %v880 = vsel %vm132, %v878, 0.0
    %881 = vadd.xlane.f32.xlu0 %v880
    %v882 = vpop.xlane.xlu0 %881
    %v883 = vsel %vm132, %v879, 0.0
    %884 = vadd.xlane.f32.xlu0 %v883
    %v885 = vpop.xlane.xlu0 %884
    %v886 = vmul.f32 %v882, %v500
    %v887 = vmul.f32 %v885, %v500
    %v888 = vadd.f32 %v886, 1e-05
    %v889 = vadd.f32 %v887, 1e-05
    %v890 = vrsqrt.pop %v888
    %v891 = vmul.f32 %v890, %v888
    %v892 = vmul.f32 %v891, %v890
    %v893 = vmul.f32 0.5, %v892
    %v894 = vsub.f32 1.5, %v893
    %v895 = vmul.f32 %v890, %v894
    %vm896 = vweird.f32 %v888
    %vm897 = vweird.f32 %v890
    %vm898 = vmor %vm896, %vm897
    %v899 = vsel %vm898, %v890, %v895
    %v900 = vrsqrt.pop %v889
    %v901 = vmul.f32 %v900, %v889
    %v902 = vmul.f32 %v901, %v900
    %v903 = vmul.f32 0.5, %v902
    %v904 = vsub.f32 1.5, %v903
    %v905 = vmul.f32 %v900, %v904
    %vm906 = vweird.f32 %v889
    %vm907 = vweird.f32 %v900
    %vm908 = vmor %vm906, %vm907
    %v909 = vsel %vm908, %v900, %v905
    %v910 = vmul.f32 %v876, %v899
    %v911 = vmul.f32 %v877, %v909
    %v912 = vmul.f32 %v122, %v910
    %v913 = vmul.f32 %v123, %v911
    %916 = vrot.lane.b32.xlu0 %v122, 96
    %v917 = vpop.permute.xlu0 %916
    %918 = vrot.lane.b32.xlu0 %v123, 96
    %v919 = vpop.permute.xlu0 %918
    %v922 = vadd.f32 %v912, %v917
    %v923 = vadd.f32 %v913, %v919
    %v924 = vmul.f32 %v922, %v554
    %v925 = vmul.f32 %v923, %v559
    %926 = vst.msk [vmem:[#allocation2] sm:$0xff] %vm132, %v924
    %927 = vst.msk [vmem:[#allocation2 + $0x8] sm:$0xff] %vm132, %v925
    // Predicated region
    $region58: #{fft_block_forward.1} parent=1 // pred_check
      _
    $region59: #{fft_block_forward.1} parent=1 // pred_check_branch
      %929 = sbr.rel (0) target = $region61
    $region60: #{fft_block_forward.1} parent=1 // pred_region
      %931 = vsyncadd [#allocation3], 0
      %s932 = sshll.u32 [#allocation2], 4
      %s933 = int_to_ptr.vmem [resolvable:$true] %s932
      %s934 = sshll.u32 %s14, 4
      %s935 = int_to_ptr.hbm [resolvable:$true] %s934
      %940 = dma.vmem_to_hbm [thread:$0]  %s933, 256, %s935, [#allocation3], 128, 128, 8
    $region61: #{fft_block_forward.1} parent=1 // pred_fallthru
      _
    // Predicated region
    $region62: #{fft_block_forward.1} parent=1 // pred_check
      _
    $region63: #{fft_block_forward.1} parent=1 // pred_check_branch
      %942 = sbr.rel (0) target = $region65
    $region64: #{fft_block_forward.1} parent=1 // pred_region
      %944 = vsyncadd [#allocation5], 0
      %s945 = sshll.u32 [#allocation4], 4
      %s946 = int_to_ptr.vmem [resolvable:$true] %s945
      %s947 = sshll.u32 %s15, 4
      %s948 = int_to_ptr.hbm [resolvable:$true] %s947
      %953 = dma.vmem_to_hbm [thread:$0]  %s946, 512, %s948, [#allocation5], 128, 128, 8
    $region65: #{fft_block_forward.1} parent=1 // pred_fallthru
      _
    // Predicated region
    $region66: #{fft_block_forward.1} parent=1 // pred_check
      _
    $region67: #{fft_block_forward.1} parent=1 // pred_check_branch
      %955 = sbr.rel (0) target = $region69
    $region68: #{fft_block_forward.1} parent=1 // pred_region
      %957 = dma.done [#allocation3], 256
    $region69: #{fft_block_forward.1} parent=1 // pred_fallthru
      _
    // Predicated region
    $region70: #{fft_block_forward.1} parent=1 // pred_check
      _
    $region71: #{fft_block_forward.1} parent=1 // pred_check_branch
      %959 = sbr.rel (0) target = $region73
    $region72: #{fft_block_forward.1} parent=1 // pred_region
      %961 = dma.done [#allocation5], 512
    $region73: #{fft_block_forward.1} parent=1 // pred_fallthru
      _
    %962 = vsyncpa [#allocation3], 1
    %963 = vsyncpa [#allocation5], 1

</llo_original>
